<compile_context>
chip_gen: v7x
topology: tpu7x:2x2x1
jax: 0.10.0
libtpu: 0.0.40
codegen_flags: <defaults>
</compile_context>

<pallas_src>
import functools

import jax
import jax.numpy as jnp
from jax.experimental import pallas as pl
from jax.experimental.pallas import tpu as pltpu


# ---------------------------------------------------------------------------
# helpers / generation-aware sizing
# ---------------------------------------------------------------------------
def _round_up(x, m):
    return (x + m - 1) // m * m


_VMEM_CAP_CACHE = []


def _vmem_capacity():
    """Physical per-core VMEM bytes (cached); conservative fallback = 64 MiB."""
    if not _VMEM_CAP_CACHE:
        cap = 64 * 1024 * 1024
        try:
            info = pltpu.get_tpu_info()
            for attr in ("vmem_capacity_bytes", "vmem_size_bytes", "vmem_bytes"):
                v = getattr(info, attr, None)
                if v:
                    cap = int(v)
                    break
        except Exception:
            pass
        _VMEM_CAP_CACHE.append(cap)
    return _VMEM_CAP_CACHE[0]


def _vmem_limit_bytes():
    # Leave 16 MiB headroom for Mosaic internal scratch / double buffers.
    return max(32 * 1024 * 1024, _vmem_capacity() - 16 * 1024 * 1024)


def _default_tile_m():
    # v5e/v6e (128 MiB VMEM): big row tiles -> MXU-bound; v7x (64 MiB): 512.
    return 768 if _vmem_capacity() >= 100 * 1024 * 1024 else 512


def _default_tile_d_cap():
    return 1024 if _vmem_capacity() >= 100 * 1024 * 1024 else 512


def _choose_row_tile(m, tile_m):
    if m > tile_m:
        return tile_m
    # Small M: split into two tiles (multiple of 8) so both TCs (v7x) get work.
    if m >= 16 and m % 16 == 0:
        return m // 2
    return m


def _pick_tile(total, cap):
    """Largest multiple of 128/256 <= cap dividing `total` (total 128-aligned)."""
    if total <= cap:
        return total
    step = 256 if total % 256 == 0 else 128
    t = (cap // step) * step
    while total % t:
        t -= step
    return t


def _pad2(a, r, c):
    pr, pc = r - a.shape[0], c - a.shape[1]
    if pr == 0 and pc == 0:
        return a
    return jnp.pad(a, ((0, pr), (0, pc)))


_INV_SQRT2 = 0.7071067811865476


def _gelu_exact(h):
    return jnp.float32(0.5) * h * (jnp.float32(1.0)
                                   + jax.lax.erf(h * jnp.float32(_INV_SQRT2)))


# ---------------------------------------------------------------------------
# channel-mixing kernel: feature (LayerNorm / Linear) axis on the LANE axis
# ---------------------------------------------------------------------------
def _ff_lane_kernel(d_true, x_ref, g_ref, bta_ref, w1_ref, b1_ref, w2_ref,
                    b2_ref, o_ref, xn_ref, acc_ref):
    """out = x + (GELU(LN(x) @ W1 + b1) @ W2 + b2) on a (tm, D_pad) tile.

    grid = (row_tiles, h_tiles); the h axis tiles the hidden (mlp) dim so the
    weights never need to be fully VMEM-resident.  acc_ref (f32) carries
    x + b2 + sum_h GELU(LN(x) @ W1[:, h]) @ W2[h, :].
    """
    h_idx = pl.program_id(1)

    @pl.when(h_idx == 0)
    def _init():
        x = x_ref[...].astype(jnp.float32)
        d_pad = x.shape[-1]
        if d_pad != d_true:                     # static: mask zero-padded lanes
            lane = jax.lax.broadcasted_iota(jnp.int32, (1, d_pad), 1)
            mask = (lane < d_true).astype(jnp.float32)
            x = x * mask                        # stats + residual stay clean
        inv_d = jnp.float32(1.0 / d_true)
        mean = jnp.sum(x, axis=-1, keepdims=True) * inv_d
        xc = x - mean
        if d_pad != d_true:
            xc = xc * mask                      # padded lanes must not add mean^2
        var = jnp.sum(xc * xc, axis=-1, keepdims=True) * inv_d   # two-pass var
        xn = xc * jax.lax.rsqrt(var + jnp.float32(1e-5))
        xn = xn * g_ref[...].astype(jnp.float32) + bta_ref[...].astype(jnp.float32)
        xn_ref[...] = xn.astype(xn_ref.dtype)   # stored in MXU operand dtype
        # residual + output bias folded in -> x is read once per tile
        acc_ref[...] = x + b2_ref[...].astype(jnp.float32)

    xn = xn_ref[...]                            # already in w1 dtype
    h = jnp.dot(xn, w1_ref[...], preferred_element_type=jnp.float32)
    h = h + b1_ref[...].astype(jnp.float32)
    h = _gelu_exact(h)
    acc_ref[...] += jnp.dot(h.astype(w2_ref.dtype), w2_ref[...],
                            preferred_element_type=jnp.float32)

    @pl.when(h_idx == pl.num_programs(1) - 1)
    def _finalize():
        o_ref[...] = acc_ref[...].astype(o_ref.dtype)


def ff_channel(x2d, gamma, beta, w1, b1, w2, b2, *, d_true,
               tile_m=None, tile_h_cap=512):
    """Fused PreNorm+FF+residual over a (M, D_pad) slab, feature axis = last."""
    M, Dp = x2d.shape
    Hp = w1.shape[1]
    tile_m = _default_tile_m() if tile_m is None else tile_m
    tm = _choose_row_tile(M, tile_m)
    th = _pick_tile(Hp, tile_h_cap)

    return pl.pallas_call(
        functools.partial(_ff_lane_kernel, d_true),
        out_shape=jax.ShapeDtypeStruct((M, Dp), x2d.dtype),
        grid_spec=pltpu.PrefetchScalarGridSpec(
            num_scalar_prefetch=0,
            grid=(pl.cdiv(M, tm), Hp // th),
            in_specs=[
                pl.BlockSpec((tm, Dp), lambda i, j: (i, 0)),   # x rows
                pl.BlockSpec((1, Dp), lambda i, j: (0, 0)),    # ln gamma
                pl.BlockSpec((1, Dp), lambda i, j: (0, 0)),    # ln beta
                pl.BlockSpec((Dp, th), lambda i, j: (0, j)),   # W1 (in,out) h-tile
                pl.BlockSpec((1, th), lambda i, j: (0, j)),    # b1 h-tile
                pl.BlockSpec((th, Dp), lambda i, j: (j, 0)),   # W2 (in,out) h-tile
                pl.BlockSpec((1, Dp), lambda i, j: (0, 0)),    # b2
            ],
            out_specs=pl.BlockSpec((tm, Dp), lambda i, j: (i, 0)),
            scratch_shapes=[pltpu.VMEM((tm, Dp), w1.dtype),     # LN(x) (op dtype)
                            pltpu.VMEM((tm, Dp), jnp.float32)],  # f32 accumulator
        ),
        compiler_params=pltpu.CompilerParams(
            dimension_semantics=("parallel", "arbitrary"),
            vmem_limit_bytes=_vmem_limit_bytes()),
        input_output_aliases={0: 0},            # activation updated in place
    )(x2d, gamma, beta, w1, b1, w2, b2)


# ---------------------------------------------------------------------------
# token-mixing kernel: feature axis on the SUBLANE axis -> no HBM transpose
# ---------------------------------------------------------------------------
def _ff_sublane_kernel(n_true, x_ref, g_ref, bta_ref, w1t_ref, b1_ref, w2t_ref,
                       b2_ref, o_ref):
    """Token-mixing PreNorm+FF+residual on a (Ns, tile_d) slab of x[b].

    The LayerNorm / Linear axis is axis 0 (tokens).  Weights arrive
    pre-transposed and pre-padded (PyTorch (out, in) layout, Hp lane-dense) so
    both matmuls contract the token / hidden axis and the lane axis stays the
    128-padded channel axis -> lane-dense loads and unmasked stores.
    """
    x = x_ref[...].astype(jnp.float32)                      # (Ns, td)
    ns = x.shape[0]
    if ns != n_true:                                        # static
        row = jax.lax.broadcasted_iota(jnp.int32, (ns, 1), 0)
        rmask = (row < n_true).astype(jnp.float32)
        xm = x * rmask
    else:
        rmask = None
        xm = x
    inv_n = jnp.float32(1.0 / n_true)
    mean = jnp.sum(xm, axis=0, keepdims=True) * inv_n        # (1, td)
    xc = xm - mean
    if rmask is not None:
        xc = xc * rmask                                      # mask padded rows
    var = jnp.sum(xc * xc, axis=0, keepdims=True) * inv_n    # two-pass var
    xn = xc * jax.lax.rsqrt(var + jnp.float32(1e-5))
    xn = xn * g_ref[...].astype(jnp.float32) + bta_ref[...].astype(jnp.float32)
    xn = xn.astype(w1t_ref.dtype)
    h = jnp.dot(w1t_ref[...], xn, preferred_element_type=jnp.float32)  # (Hp, td)
    h = h + b1_ref[...].astype(jnp.float32)
    h = _gelu_exact(h)
    y = jnp.dot(w2t_ref[...], h.astype(w2t_ref.dtype),
                preferred_element_type=jnp.float32)                    # (Ns, td)
    y = y + b2_ref[...].astype(jnp.float32)
    o_ref[...] = (x + y).astype(o_ref.dtype)


def ff_token(x3d, gamma, beta, w1t, b1, w2t, b2, *, n_true, tile_d_cap=None):
    """Fused token-mixing PreNorm+FF+residual on x (B, Ns, D_pad), in layout."""
    B, Ns, Dp = x3d.shape
    Hp = w1t.shape[0]
    tile_d_cap = _default_tile_d_cap() if tile_d_cap is None else tile_d_cap
    td = _pick_tile(Dp, tile_d_cap)

    return pl.pallas_call(
        functools.partial(_ff_sublane_kernel, n_true),
        out_shape=jax.ShapeDtypeStruct((B, Ns, Dp), x3d.dtype),
        grid_spec=pltpu.PrefetchScalarGridSpec(
            num_scalar_prefetch=0,
            grid=(B, Dp // td),
            in_specs=[
                pl.BlockSpec((None, Ns, td), lambda b, d: (b, 0, d)),  # x slab
                pl.BlockSpec((Ns, 1), lambda b, d: (0, 0)),            # ln gamma
                pl.BlockSpec((Ns, 1), lambda b, d: (0, 0)),            # ln beta
                pl.BlockSpec((Hp, Ns), lambda b, d: (0, 0)),           # W1^T
                pl.BlockSpec((Hp, 1), lambda b, d: (0, 0)),            # b1
                pl.BlockSpec((Ns, Hp), lambda b, d: (0, 0)),           # W2^T
                pl.BlockSpec((Ns, 1), lambda b, d: (0, 0)),            # b2
            ],
            out_specs=pl.BlockSpec((None, Ns, td), lambda b, d: (b, 0, d)),
        ),
        compiler_params=pltpu.CompilerParams(
            dimension_semantics=("parallel", "parallel"),
            vmem_limit_bytes=_vmem_limit_bytes()),
        input_output_aliases={0: 0},            # activation updated in place
    )(x3d, gamma, beta, w1t, b1, w2t, b2)


# ---------------------------------------------------------------------------
# parameters: raw (PyTorch-like) init + one-time device-layout preparation
# ---------------------------------------------------------------------------
def init_params(key, tok_dim, dim, depth, mlp_dim, dtype=jnp.float32):
    """Synthetic parameters. Weights stored (in, out); biases/gamma/beta 1-D."""
    def linear(k, fan_in, fan_out):
        kw, kb = jax.random.split(k)
        bound = 1.0 / (fan_in ** 0.5)
        w = jax.random.uniform(kw, (fan_in, fan_out), dtype, -bound, bound)
        b = jax.random.uniform(kb, (fan_out,), dtype, -bound, bound)
        return w, b

    params = []
    for _ in range(depth):
        key, k1, k2, k3, k4 = jax.random.split(key, 5)
        w1t, b1t = linear(k1, tok_dim, mlp_dim)       # token-mixing FF
        w2t, b2t = linear(k2, mlp_dim, tok_dim)
        tok = (jnp.ones((tok_dim,), dtype), jnp.zeros((tok_dim,), dtype),
               w1t, b1t, w2t, b2t)
        w1c, b1c = linear(k3, dim, mlp_dim)           # channel-mixing FF
        w2c, b2c = linear(k4, mlp_dim, dim)
        chan = (jnp.ones((dim,), dtype), jnp.zeros((dim,), dtype),
                w1c, b1c, w2c, b2c)
        params.append((tok, chan))
    return params


def prepare_params(params, tok_dim, dim, mlp_dim):
    """One-time pad/transpose into kernel layouts (outside the forward pass)."""
    N, D, H = tok_dim, dim, mlp_dim
    Ns = _round_up(N, 8)                                        # sublane align
    Dp = _round_up(D, 256) if D > 128 else _round_up(D, 128)    # lane / MXU
    Hp = _round_up(H, 256) if H > 128 else _round_up(H, 128)

    prepped = []
    for tok_p, chan_p in params:
        g_t, b_t, w1_t, b1_t, w2_t, b2_t = tok_p
        g_c, b_c, w1_c, b1_c, w2_c, b2_c = chan_p
        tok = (
            _pad2(g_t.reshape(N, 1), Ns, 1),
            _pad2(b_t.reshape(N, 1), Ns, 1),
            _pad2(w1_t.T, Hp, Ns),                 # (H,N) -> (Hp,Ns), (out,in)
            _pad2(b1_t.reshape(-1, 1), Hp, 1),
            _pad2(w2_t.T, Ns, Hp),                 # (N,H) -> (Ns,Hp), lane-dense
            _pad2(b2_t.reshape(N, 1), Ns, 1),
        )
        chan = (
            _pad2(g_c.reshape(1, D), 1, Dp),
            _pad2(b_c.reshape(1, D), 1, Dp),
            _pad2(w1_c, Dp, Hp),
            _pad2(b1_c.reshape(1, H), 1, Hp),
            _pad2(w2_c, Hp, Dp),
            _pad2(b2_c.reshape(1, D), 1, Dp),
        )
        prepped.append((tok, chan))
    return prepped, (N, Ns, D, Dp, H, Hp)


# ---------------------------------------------------------------------------
# forward
# ---------------------------------------------------------------------------
def transformer_forward(x, prepped, dims):
    """x: (B, tok_dim, dim) -> (B, tok_dim, dim)."""
    N, Ns, D, Dp, _H, _Hp = dims
    B = x.shape[0]
    if Ns != N or Dp != D:
        x = jnp.pad(x, ((0, 0), (0, Ns - N), (0, Dp - D)))

    for tok_p, chan_p in prepped:
        # token mixing: feature = token axis, computed on the sublane axis of
        # the un-transposed activation (no HBM transpose).
        x = ff_token(x, *tok_p, n_true=N)
        # channel mixing: feature = channel axis (lanes), padded to Dp/Hp.
        x2 = ff_channel(x.reshape(B * Ns, Dp), *chan_p, d_true=D)
        x = x2.reshape(B, Ns, Dp)

    return x[:, :N, :D]


def _reference_forward(x, params):
    """Pure-JAX reference of the same math (for sanity)."""
    def ln_ff(x2, g, b, w1, b1, w2, b2):
        mean = jnp.mean(x2, axis=-1, keepdims=True)
        var = jnp.mean((x2 - mean) ** 2, axis=-1, keepdims=True)
        xn = (x2 - mean) / jnp.sqrt(var + 1e-5) * g + b
        h = xn @ w1 + b1
        h = 0.5 * h * (1.0 + jax.lax.erf(h / jnp.sqrt(2.0)))
        return x2 + (h @ w2 + b2)

    for tok_p, chan_p in params:
        x_tok = jnp.swapaxes(x, -1, -2)
        x_tok = ln_ff(x_tok, *tok_p)
        x = jnp.swapaxes(x_tok, -1, -2)
        x = ln_ff(x, *chan_p)
    return x


if __name__ == "__main__":
    # Small shapes consistent with the module's forward:
    # tok_dim = number of tokens, dim = channel width.
    B, tok_dim, dim, mlp_dim, depth = 2, 8, 32, 64, 2

    key = jax.random.PRNGKey(0)
    kx, kp = jax.random.split(key)
    x = jax.random.normal(kx, (B, tok_dim, dim), jnp.float32)
    params = init_params(kp, tok_dim, dim, depth, mlp_dim)

    # One-time weight transposes / pads (outside the per-call forward path).
    prepped, dims = prepare_params(params, tok_dim, dim, mlp_dim)

    fwd = jax.jit(functools.partial(transformer_forward, dims=dims))
    out = jax.block_until_ready(fwd(x, prepped))

    ref = _reference_forward(x, params)
    assert out.shape == (B, tok_dim, dim)
    assert jnp.allclose(out, ref, atol=2e-4, rtol=2e-4), \
        float(jnp.max(jnp.abs(out - ref)))

    print("KERNEL_OK")
</pallas_src>

<mosaic_0001>
module attributes {stable_mosaic.version = 11 : i64} {
  func.func @_ff_sublane_kernel(%arg0: i32, %arg1: i32, %arg2: memref<1x8x128xf32, #tpu.memory_space<vmem>>, %arg3: memref<8x1xf32, #tpu.memory_space<vmem>>, %arg4: memref<8x1xf32, #tpu.memory_space<vmem>>, %arg5: memref<128x8xf32, #tpu.memory_space<vmem>>, %arg6: memref<128x1xf32, #tpu.memory_space<vmem>>, %arg7: memref<8x128xf32, #tpu.memory_space<vmem>>, %arg8: memref<8x1xf32, #tpu.memory_space<vmem>>, %arg9: memref<1x8x128xf32, #tpu.memory_space<vmem>>) attributes {dimension_semantics = [#tpu.dimension_semantics<parallel>, #tpu.dimension_semantics<parallel>], iteration_bounds = array<i64: 2, 1>, scalar_prefetch = 0 : i64, scratch_operands = 0 : i64, tpu.core_type = #tpu.core_type<tc>, window_params = [{transform_indices = @transform_0, window_bounds = array<i64: 1, 8, 128>}, {pipeline_mode = #tpu.pipeline_mode<synchronous>, transform_indices = @transform_1, window_bounds = array<i64: 8, 1>}, {pipeline_mode = #tpu.pipeline_mode<synchronous>, transform_indices = @transform_2, window_bounds = array<i64: 8, 1>}, {pipeline_mode = #tpu.pipeline_mode<synchronous>, transform_indices = @transform_3, window_bounds = array<i64: 128, 8>}, {pipeline_mode = #tpu.pipeline_mode<synchronous>, transform_indices = @transform_4, window_bounds = array<i64: 128, 1>}, {pipeline_mode = #tpu.pipeline_mode<synchronous>, transform_indices = @transform_5, window_bounds = array<i64: 8, 128>}, {pipeline_mode = #tpu.pipeline_mode<synchronous>, transform_indices = @transform_6, window_bounds = array<i64: 8, 1>}, {transform_indices = @transform_7, window_bounds = array<i64: 1, 8, 128>}]} {
    %c0 = arith.constant 0 : index
    %c0_0 = arith.constant 0 : index
    %c0_1 = arith.constant 0 : index
    %0 = vector.load %arg2[%c0, %c0_0, %c0_1] : memref<1x8x128xf32, #tpu.memory_space<vmem>>, vector<1x8x128xf32>
    %1 = vector.shape_cast %0 : vector<1x8x128xf32> to vector<8x128xf32>
    %cst = arith.constant dense<0.000000e+00> : vector<128xf32>
    %2 = vector.multi_reduction <add>, %1, %cst [0] : vector<8x128xf32> to vector<128xf32>
    %3 = vector.shape_cast %2 : vector<128xf32> to vector<1x128xf32>
    %cst_2 = arith.constant 1.250000e-01 : f32
    %4 = vector.broadcast %cst_2 : f32 to vector<1x128xf32>
    %5 = arith.mulf %3, %4 : vector<1x128xf32>
    %6 = vector.broadcast %5 : vector<1x128xf32> to vector<8x128xf32>
    %7 = arith.subf %1, %6 : vector<8x128xf32>
    %8 = arith.mulf %7, %7 : vector<8x128xf32>
    %cst_3 = arith.constant dense<0.000000e+00> : vector<128xf32>
    %9 = vector.multi_reduction <add>, %8, %cst_3 [0] : vector<8x128xf32> to vector<128xf32>
    %10 = vector.shape_cast %9 : vector<128xf32> to vector<1x128xf32>
    %cst_4 = arith.constant 1.250000e-01 : f32
    %11 = vector.broadcast %cst_4 : f32 to vector<1x128xf32>
    %12 = arith.mulf %10, %11 : vector<1x128xf32>
    %cst_5 = arith.constant 9.99999974E-6 : f32
    %13 = vector.broadcast %cst_5 : f32 to vector<1x128xf32>
    %14 = arith.addf %12, %13 : vector<1x128xf32>
    %15 = math.rsqrt %14 : vector<1x128xf32>
    %16 = vector.broadcast %15 : vector<1x128xf32> to vector<8x128xf32>
    %17 = arith.mulf %7, %16 : vector<8x128xf32>
    %c0_6 = arith.constant 0 : index
    %c0_7 = arith.constant 0 : index
    %18 = vector.load %arg3[%c0_6, %c0_7] : memref<8x1xf32, #tpu.memory_space<vmem>>, vector<8x1xf32>
    %19 = vector.broadcast %18 : vector<8x1xf32> to vector<8x128xf32>
    %20 = arith.mulf %17, %19 : vector<8x128xf32>
    %c0_8 = arith.constant 0 : index
    %c0_9 = arith.constant 0 : index
    %21 = vector.load %arg4[%c0_8, %c0_9] : memref<8x1xf32, #tpu.memory_space<vmem>>, vector<8x1xf32>
    %22 = vector.broadcast %21 : vector<8x1xf32> to vector<8x128xf32>
    %23 = arith.addf %20, %22 : vector<8x128xf32>
    %c0_10 = arith.constant 0 : index
    %c0_11 = arith.constant 0 : index
    %24 = vector.load %arg5[%c0_10, %c0_11] : memref<128x8xf32, #tpu.memory_space<vmem>>, vector<128x8xf32>
    %cst_12 = arith.constant dense<0.000000e+00> : vector<128x128xf32>
    %25 = tpu.matmul %24, %23, %cst_12 {dimension_numbers = #tpu.dot_dimension_numbers<[1], [0], [0], [1], [0, 0, 1, 1], [], []>} : vector<128x8xf32>, vector<8x128xf32>, vector<128x128xf32> -> vector<128x128xf32>
    %c0_13 = arith.constant 0 : index
    %c0_14 = arith.constant 0 : index
    %26 = vector.load %arg6[%c0_13, %c0_14] : memref<128x1xf32, #tpu.memory_space<vmem>>, vector<128x1xf32>
    %27 = vector.broadcast %26 : vector<128x1xf32> to vector<128x128xf32>
    %28 = arith.addf %25, %27 : vector<128x128xf32>
    %cst_15 = arith.constant 5.000000e-01 : f32
    %29 = vector.broadcast %cst_15 : f32 to vector<128x128xf32>
    %30 = arith.mulf %29, %28 : vector<128x128xf32>
    %cst_16 = arith.constant 0.707106769 : f32
    %31 = vector.broadcast %cst_16 : f32 to vector<128x128xf32>
    %32 = arith.mulf %28, %31 : vector<128x128xf32>
    %33 = math.erf %32 : vector<128x128xf32>
    %cst_17 = arith.constant 1.000000e+00 : f32
    %34 = vector.broadcast %cst_17 : f32 to vector<128x128xf32>
    %35 = arith.addf %34, %33 : vector<128x128xf32>
    %36 = arith.mulf %30, %35 : vector<128x128xf32>
    %c0_18 = arith.constant 0 : index
    %c0_19 = arith.constant 0 : index
    %37 = vector.load %arg7[%c0_18, %c0_19] : memref<8x128xf32, #tpu.memory_space<vmem>>, vector<8x128xf32>
    %cst_20 = arith.constant dense<0.000000e+00> : vector<8x128xf32>
    %38 = tpu.matmul %37, %36, %cst_20 {dimension_numbers = #tpu.dot_dimension_numbers<[1], [0], [0], [1], [0, 0, 1, 1], [], []>} : vector<8x128xf32>, vector<128x128xf32>, vector<8x128xf32> -> vector<8x128xf32>
    %c0_21 = arith.constant 0 : index
    %c0_22 = arith.constant 0 : index
    %39 = vector.load %arg8[%c0_21, %c0_22] : memref<8x1xf32, #tpu.memory_space<vmem>>, vector<8x1xf32>
    %40 = vector.broadcast %39 : vector<8x1xf32> to vector<8x128xf32>
    %41 = arith.addf %38, %40 : vector<8x128xf32>
    %42 = arith.addf %1, %41 : vector<8x128xf32>
    %c0_23 = arith.constant 0 : index
    %c0_24 = arith.constant 0 : index
    %c0_25 = arith.constant 0 : index
    %43 = vector.load %arg9[%c0_23, %c0_24, %c0_25] : memref<1x8x128xf32, #tpu.memory_space<vmem>>, vector<1x8x128xf32>
    %44 = vector.shape_cast %43 : vector<1x8x128xf32> to vector<8x128xf32>
    %45 = vector.shape_cast %42 : vector<8x128xf32> to vector<1x8x128xf32>
    tpu.vector_store %arg9[%c0_23, %c0_24, %c0_25], %45 {strides = array<i32>} : memref<1x8x128xf32, #tpu.memory_space<vmem>>, vector<1x8x128xf32>,
    return
  }
  func.func @transform_0(%arg0: i32, %arg1: i32) -> (i32, i32, i32) {
    %c0_i32 = arith.constant 0 : i32
    %c0_i32_0 = arith.constant 0 : i32
    return %arg0, %c0_i32, %arg1 : i32, i32, i32
  }
  func.func @transform_1(%arg0: i32, %arg1: i32) -> (i32, i32) {
    %c0_i32 = arith.constant 0 : i32
    %c0_i32_0 = arith.constant 0 : i32
    %c0_i32_1 = arith.constant 0 : i32
    return %c0_i32, %c0_i32_0 : i32, i32
  }
  func.func @transform_2(%arg0: i32, %arg1: i32) -> (i32, i32) {
    %c0_i32 = arith.constant 0 : i32
    %c0_i32_0 = arith.constant 0 : i32
    %c0_i32_1 = arith.constant 0 : i32
    return %c0_i32, %c0_i32_0 : i32, i32
  }
  func.func @transform_3(%arg0: i32, %arg1: i32) -> (i32, i32) {
    %c0_i32 = arith.constant 0 : i32
    %c0_i32_0 = arith.constant 0 : i32
    %c0_i32_1 = arith.constant 0 : i32
    return %c0_i32, %c0_i32_0 : i32, i32
  }
  func.func @transform_4(%arg0: i32, %arg1: i32) -> (i32, i32) {
    %c0_i32 = arith.constant 0 : i32
    %c0_i32_0 = arith.constant 0 : i32
    %c0_i32_1 = arith.constant 0 : i32
    return %c0_i32, %c0_i32_0 : i32, i32
  }
  func.func @transform_5(%arg0: i32, %arg1: i32) -> (i32, i32) {
    %c0_i32 = arith.constant 0 : i32
    %c0_i32_0 = arith.constant 0 : i32
    %c0_i32_1 = arith.constant 0 : i32
    return %c0_i32, %c0_i32_0 : i32, i32
  }
  func.func @transform_6(%arg0: i32, %arg1: i32) -> (i32, i32) {
    %c0_i32 = arith.constant 0 : i32
    %c0_i32_0 = arith.constant 0 : i32
    %c0_i32_1 = arith.constant 0 : i32
    return %c0_i32, %c0_i32_0 : i32, i32
  }
  func.func @transform_7(%arg0: i32, %arg1: i32) -> (i32, i32, i32) {
    %c0_i32 = arith.constant 0 : i32
    %c0_i32_0 = arith.constant 0 : i32
    return %arg0, %c0_i32, %arg1 : i32, i32, i32
  }
}

module attributes {stable_mosaic.version = 11 : i64} {
  func.func @_ff_lane_kernel(%arg0: i32, %arg1: i32, %arg2: memref<8x128xf32, #tpu.memory_space<vmem>>, %arg3: memref<1x128xf32, #tpu.memory_space<vmem>>, %arg4: memref<1x128xf32, #tpu.memory_space<vmem>>, %arg5: memref<128x128xf32, #tpu.memory_space<vmem>>, %arg6: memref<1x128xf32, #tpu.memory_space<vmem>>, %arg7: memref<128x128xf32, #tpu.memory_space<vmem>>, %arg8: memref<1x128xf32, #tpu.memory_space<vmem>>, %arg9: memref<8x128xf32, #tpu.memory_space<vmem>>, %arg10: memref<8x128xf32, #tpu.memory_space<vmem>>, %arg11: memref<8x128xf32, #tpu.memory_space<vmem>>) attributes {dimension_semantics = [#tpu.dimension_semantics<parallel>, #tpu.dimension_semantics<arbitrary>], iteration_bounds = array<i64: 2, 1>, scalar_prefetch = 0 : i64, scratch_operands = 2 : i64, tpu.core_type = #tpu.core_type<tc>, window_params = [{transform_indices = @transform_0, window_bounds = array<i64: 8, 128>}, {pipeline_mode = #tpu.pipeline_mode<synchronous>, transform_indices = @transform_1, window_bounds = array<i64: 1, 128>}, {pipeline_mode = #tpu.pipeline_mode<synchronous>, transform_indices = @transform_2, window_bounds = array<i64: 1, 128>}, {transform_indices = @transform_3, window_bounds = array<i64: 128, 128>}, {transform_indices = @transform_4, window_bounds = array<i64: 1, 128>}, {transform_indices = @transform_5, window_bounds = array<i64: 128, 128>}, {pipeline_mode = #tpu.pipeline_mode<synchronous>, transform_indices = @transform_6, window_bounds = array<i64: 1, 128>}, {transform_indices = @transform_7, window_bounds = array<i64: 8, 128>}]} {
    %c0_i32 = arith.constant 0 : i32
    %0 = arith.cmpi eq, %arg1, %c0_i32 : i32
    %1 = arith.extui %0 : i1 to i32
    %c0_i32_0 = arith.constant 0 : i32
    %2 = arith.cmpi ne, %1, %c0_i32_0 : i32
    scf.if %2 {
      %c0_18 = arith.constant 0 : index
      %c0_19 = arith.constant 0 : index
      %25 = vector.load %arg2[%c0_18, %c0_19] : memref<8x128xf32, #tpu.memory_space<vmem>>, vector<8x128xf32>
      %26 = tpu.iota {dimensions = array<i32: 1>} : vector<1x128xi32>
      %c32_i32 = arith.constant 32 : i32
      %27 = vector.broadcast %c32_i32 : i32 to vector<1x128xi32>
      %28 = arith.cmpi slt, %26, %27 : vector<1x128xi32>
      %29 = arith.extui %28 : vector<1x128xi1> to vector<1x128xi32>
      %30 = arith.sitofp %29 : vector<1x128xi32> to vector<1x128xf32>
      %31 = vector.broadcast %30 : vector<1x128xf32> to vector<8x128xf32>
      %32 = arith.mulf %25, %31 : vector<8x128xf32>
      %cst_20 = arith.constant dense<0.000000e+00> : vector<8xf32>
      %33 = vector.multi_reduction <add>, %32, %cst_20 [1] : vector<8x128xf32> to vector<8xf32>
      %34 = vector.shape_cast %33 : vector<8xf32> to vector<8x1xf32>
      %cst_21 = arith.constant 3.125000e-02 : f32
      %35 = vector.broadcast %cst_21 : f32 to vector<8x1xf32>
      %36 = arith.mulf %34, %35 : vector<8x1xf32>
      %37 = vector.broadcast %36 : vector<8x1xf32> to vector<8x128xf32>
      %38 = arith.subf %32, %37 : vector<8x128xf32>
      %39 = vector.broadcast %30 : vector<1x128xf32> to vector<8x128xf32>
      %40 = arith.mulf %38, %39 : vector<8x128xf32>
      %41 = arith.mulf %40, %40 : vector<8x128xf32>
      %cst_22 = arith.constant dense<0.000000e+00> : vector<8xf32>
      %42 = vector.multi_reduction <add>, %41, %cst_22 [1] : vector<8x128xf32> to vector<8xf32>
      %43 = vector.shape_cast %42 : vector<8xf32> to vector<8x1xf32>
      %cst_23 = arith.constant 3.125000e-02 : f32
      %44 = vector.broadcast %cst_23 : f32 to vector<8x1xf32>
      %45 = arith.mulf %43, %44 : vector<8x1xf32>
      %cst_24 = arith.constant 9.99999974E-6 : f32
      %46 = vector.broadcast %cst_24 : f32 to vector<8x1xf32>
      %47 = arith.addf %45, %46 : vector<8x1xf32>
      %48 = math.rsqrt %47 : vector<8x1xf32>
      %49 = vector.broadcast %48 : vector<8x1xf32> to vector<8x128xf32>
      %50 = arith.mulf %40, %49 : vector<8x128xf32>
      %c0_25 = arith.constant 0 : index
      %c0_26 = arith.constant 0 : index
      %51 = vector.load %arg3[%c0_25, %c0_26] : memref<1x128xf32, #tpu.memory_space<vmem>>, vector<1x128xf32>
      %52 = vector.broadcast %51 : vector<1x128xf32> to vector<8x128xf32>
      %53 = arith.mulf %50, %52 : vector<8x128xf32>
      %c0_27 = arith.constant 0 : index
      %c0_28 = arith.constant 0 : index
      %54 = vector.load %arg4[%c0_27, %c0_28] : memref<1x128xf32, #tpu.memory_space<vmem>>, vector<1x128xf32>
      %55 = vector.broadcast %54 : vector<1x128xf32> to vector<8x128xf32>
      %56 = arith.addf %53, %55 : vector<8x128xf32>
      %c0_29 = arith.constant 0 : index
      %c0_30 = arith.constant 0 : index
      %57 = vector.load %arg10[%c0_29, %c0_30] : memref<8x128xf32, #tpu.memory_space<vmem>>, vector<8x128xf32>
      tpu.vector_store %arg10[%c0_29, %c0_30], %56 {strides = array<i32>} : memref<8x128xf32, #tpu.memory_space<vmem>>, vector<8x128xf32>,
      %c0_31 = arith.constant 0 : index
      %c0_32 = arith.constant 0 : index
      %58 = vector.load %arg8[%c0_31, %c0_32] : memref<1x128xf32, #tpu.memory_space<vmem>>, vector<1x128xf32>
      %59 = vector.broadcast %58 : vector<1x128xf32> to vector<8x128xf32>
      %60 = arith.addf %32, %59 : vector<8x128xf32>
      %c0_33 = arith.constant 0 : index
      %c0_34 = arith.constant 0 : index
      %61 = vector.load %arg11[%c0_33, %c0_34] : memref<8x128xf32, #tpu.memory_space<vmem>>, vector<8x128xf32>
      tpu.vector_store %arg11[%c0_33, %c0_34], %60 {strides = array<i32>} : memref<8x128xf32, #tpu.memory_space<vmem>>, vector<8x128xf32>,
    } else {
    }
    %c0 = arith.constant 0 : index
    %c0_1 = arith.constant 0 : index
    %3 = vector.load %arg10[%c0, %c0_1] : memref<8x128xf32, #tpu.memory_space<vmem>>, vector<8x128xf32>
    %c0_2 = arith.constant 0 : index
    %c0_3 = arith.constant 0 : index
    %4 = vector.load %arg5[%c0_2, %c0_3] : memref<128x128xf32, #tpu.memory_space<vmem>>, vector<128x128xf32>
    %cst = arith.constant dense<0.000000e+00> : vector<8x128xf32>
    %5 = tpu.matmul %3, %4, %cst {dimension_numbers = #tpu.dot_dimension_numbers<[1], [0], [0], [1], [0, 0, 1, 1], [], []>} : vector<8x128xf32>, vector<128x128xf32>, vector<8x128xf32> -> vector<8x128xf32>
    %c0_4 = arith.constant 0 : index
    %c0_5 = arith.constant 0 : index
    %6 = vector.load %arg6[%c0_4, %c0_5] : memref<1x128xf32, #tpu.memory_space<vmem>>, vector<1x128xf32>
    %7 = vector.broadcast %6 : vector<1x128xf32> to vector<8x128xf32>
    %8 = arith.addf %5, %7 : vector<8x128xf32>
    %cst_6 = arith.constant 5.000000e-01 : f32
    %9 = vector.broadcast %cst_6 : f32 to vector<8x128xf32>
    %10 = arith.mulf %9, %8 : vector<8x128xf32>
    %cst_7 = arith.constant 0.707106769 : f32
    %11 = vector.broadcast %cst_7 : f32 to vector<8x128xf32>
    %12 = arith.mulf %8, %11 : vector<8x128xf32>
    %13 = math.erf %12 : vector<8x128xf32>
    %cst_8 = arith.constant 1.000000e+00 : f32
    %14 = vector.broadcast %cst_8 : f32 to vector<8x128xf32>
    %15 = arith.addf %14, %13 : vector<8x128xf32>
    %16 = arith.mulf %10, %15 : vector<8x128xf32>
    %c0_9 = arith.constant 0 : index
    %c0_10 = arith.constant 0 : index
    %17 = vector.load %arg11[%c0_9, %c0_10] : memref<8x128xf32, #tpu.memory_space<vmem>>, vector<8x128xf32>
    %c0_11 = arith.constant 0 : index
    %c0_12 = arith.constant 0 : index
    %18 = vector.load %arg7[%c0_11, %c0_12] : memref<128x128xf32, #tpu.memory_space<vmem>>, vector<128x128xf32>
    %cst_13 = arith.constant dense<0.000000e+00> : vector<8x128xf32>
    %19 = tpu.matmul %16, %18, %cst_13 {dimension_numbers = #tpu.dot_dimension_numbers<[1], [0], [0], [1], [0, 0, 1, 1], [], []>} : vector<8x128xf32>, vector<128x128xf32>, vector<8x128xf32> -> vector<8x128xf32>
    %20 = arith.addf %17, %19 : vector<8x128xf32>
    %c0_14 = arith.constant 0 : index
    %c0_15 = arith.constant 0 : index
    %21 = vector.load %arg11[%c0_14, %c0_15] : memref<8x128xf32, #tpu.memory_space<vmem>>, vector<8x128xf32>
    tpu.vector_store %arg11[%c0_14, %c0_15], %20 {strides = array<i32>} : memref<8x128xf32, #tpu.memory_space<vmem>>, vector<8x128xf32>,
    %c0_i32_16 = arith.constant 0 : i32
    %22 = arith.cmpi eq, %arg1, %c0_i32_16 : i32
    %23 = arith.extui %22 : i1 to i32
    %c0_i32_17 = arith.constant 0 : i32
    %24 = arith.cmpi ne, %23, %c0_i32_17 : i32
    scf.if %24 {
      %c0_18 = arith.constant 0 : index
      %c0_19 = arith.constant 0 : index
      %25 = vector.load %arg11[%c0_18, %c0_19] : memref<8x128xf32, #tpu.memory_space<vmem>>, vector<8x128xf32>
      %c0_20 = arith.constant 0 : index
      %c0_21 = arith.constant 0 : index
      %26 = vector.load %arg9[%c0_20, %c0_21] : memref<8x128xf32, #tpu.memory_space<vmem>>, vector<8x128xf32>
      tpu.vector_store %arg9[%c0_20, %c0_21], %25 {strides = array<i32>} : memref<8x128xf32, #tpu.memory_space<vmem>>, vector<8x128xf32>,
    } else {
    }
    return
  }
  func.func @transform_0(%arg0: i32, %arg1: i32) -> (i32, i32) {
    %c0_i32 = arith.constant 0 : i32
    %c0_i32_0 = arith.constant 0 : i32
    return %arg0, %c0_i32 : i32, i32
  }
  func.func @transform_1(%arg0: i32, %arg1: i32) -> (i32, i32) {
    %c0_i32 = arith.constant 0 : i32
    %c0_i32_0 = arith.constant 0 : i32
    %c0_i32_1 = arith.constant 0 : i32
    return %c0_i32, %c0_i32_0 : i32, i32
  }
  func.func @transform_2(%arg0: i32, %arg1: i32) -> (i32, i32) {
    %c0_i32 = arith.constant 0 : i32
    %c0_i32_0 = arith.constant 0 : i32
    %c0_i32_1 = arith.constant 0 : i32
    return %c0_i32, %c0_i32_0 : i32, i32
  }
  func.func @transform_3(%arg0: i32, %arg1: i32) -> (i32, i32) {
    %c0_i32 = arith.constant 0 : i32
    %c0_i32_0 = arith.constant 0 : i32
    return %c0_i32, %arg1 : i32, i32
  }
  func.func @transform_4(%arg0: i32, %arg1: i32) -> (i32, i32) {
    %c0_i32 = arith.constant 0 : i32
    %c0_i32_0 = arith.constant 0 : i32
    return %c0_i32, %arg1 : i32, i32
  }
  func.func @transform_5(%arg0: i32, %arg1: i32) -> (i32, i32) {
    %c0_i32 = arith.constant 0 : i32
    %c0_i32_0 = arith.constant 0 : i32
    return %arg1, %c0_i32 : i32, i32
  }
  func.func @transform_6(%arg0: i32, %arg1: i32) -> (i32, i32) {
    %c0_i32 = arith.constant 0 : i32
    %c0_i32_0 = arith.constant 0 : i32
    %c0_i32_1 = arith.constant 0 : i32
    return %c0_i32, %c0_i32_0 : i32, i32
  }
  func.func @transform_7(%arg0: i32, %arg1: i32) -> (i32, i32) {
    %c0_i32 = arith.constant 0 : i32
    %c0_i32_0 = arith.constant 0 : i32
    return %arg0, %c0_i32 : i32, i32
  }
}

</mosaic_0001>

<llo_original>
// kernel: transformer_forward.4
$region0: #{transformer_forward.4}
  #allocation0 [shape = 'u32[]', space=smem, size = 0x4, offset = 0x4, fixed_abs, tag = 'smem constant byte address 0x4 - core index']
  #allocation1 [shape = 'u32[144,128]{1,0:T(1,128)}', space=vmem, size = 0x12000, scoped, tag = 'internal scratch']
  %s0 = inlined_call_operand.vmem [shape: f32[2,8,128], index: 0, kind: input, shape index: {}, may-alias: {0,7}]
  %s1 = inlined_call_operand.vmem [shape: f32[8,1], index: 1, kind: input, shape index: {}]
  %s2 = inlined_call_operand.vmem [shape: f32[8,1], index: 2, kind: input, shape index: {}]
  %s3 = inlined_call_operand.vmem [shape: f32[128,8], index: 3, kind: input, shape index: {}]
  %s4 = inlined_call_operand.vmem [shape: f32[128,1], index: 4, kind: input, shape index: {}]
  %s5 = inlined_call_operand.vmem [shape: f32[8,128], index: 5, kind: input, shape index: {}]
  %s6 = inlined_call_operand.vmem [shape: f32[8,1], index: 6, kind: input, shape index: {}]
  %s7 = inlined_call_operand.vmem [shape: f32[2,8,128], index: 7, kind: output, shape index: {}, may-alias: {0,7}]
  %s8 = sld [smem:[#allocation0]]
  $region61: #{transformer_forward.4} parent=0
    _
  %s10 = ssub.s32 1, %s8
  %s11 = scalar_select 0, %s10, %s8
  loop: start=0, step=1, limit=4
  $region2: #{transformer_forward.4} parent=0 // loop_pre_header
    _
  $region3: #{transformer_forward.4} parent=0 // loop_header
    %s13 = sphi 0, %s17
    %p14 = scmp.ge.s32.totalorder %s13, 4
    %s20 = sphi 0, %s32
    %s21 = sphi 0, %s28
    %s22 = sphi 0, %s20
    %s23 = sphi 0, %s21
    %s24 = sphi 0, %s22
    %s25 = sphi 0, %s23
    %s37 = sphi 0, %s39
    %s40 = sphi 0, %s37
    %s41 = sphi 0, %s40
    %s57 = sphi 0, %s41
    %s61 = sphi 0, %s61
    %s63 = sphi 0, %s61
    %s64 = sphi 0, %s63
    %s78 = sphi 0, %s64
    %s82 = sphi 0, %s82
    %s84 = sphi 0, %s82
    %s85 = sphi 0, %s84
    %s99 = sphi 0, %s85
    %s103 = sphi 0, %s103
    %s105 = sphi 0, %s103
    %s106 = sphi 0, %s105
    %s120 = sphi 0, %s106
    %s124 = sphi 0, %s124
    %s126 = sphi 0, %s124
    %s127 = sphi 0, %s126
    %s141 = sphi 0, %s127
    %s145 = sphi 0, %s145
    %s147 = sphi 0, %s145
    %s148 = sphi 0, %s147
    %s162 = sphi 0, %s148
    %s166 = sphi 0, %s166
    %s168 = sphi 0, %s166
    %s169 = sphi 0, %s168
    %s183 = sphi 0, %s169
    %s191 = sphi 0, %s193
    %s194 = sphi 0, %s191
    %s195 = sphi 0, %s194
    %s211 = sphi 0, %s195
  $region4: #{transformer_forward.4} parent=0 // loop_header_branch
    %16 = sbr.rel (%p14) target = $region8
  $region5: #{transformer_forward.4} parent=0 // loop_body
    %s18 = ssub.s32 %s13, 1
    %s19 = ssub.s32 %s13, 2
    %s26 = sadd.s32 1, %s21
    %p27 = scmp.ge.s32.totalorder %s26, 1
    %s28 = scalar_select %p27, 0, %s26
    %s29 = sadd.s32 1, %s20
    %s30 = scalar_select %p27, %s29, %s20
    %p31 = scmp.ge.s32.totalorder %s30, 2
    %s32 = scalar_select %p31, 0, %s30
    %s33 = ssub.s32 %s20, %s32
    %s34 = ssub.s32 %s21, %s28
    %s35 = sor.u32 %s33, %s34
    %p36 = scmp.eq.s32.totalorder %s35, 0
    %s38 = sadd.s32 %s37, 1
    %s39 = scalar_select %p36, %s37, %s38
    %p42 = pneg %p36
    %p43 = scmp.eq.s32.totalorder %s13, 1
    %p44 = por %p42, %p43
    %p45 = scmp.ne.s32.totalorder %s37, %s40
    %p46 = scmp.eq.s32.totalorder %s13, 0
    %p47 = por %p45, %p46
    %p48 = scmp.ne.s32.totalorder %s37, %s40
    %p49 = scmp.eq.s32.totalorder %s18, 1
    %p50 = por %p48, %p49
    %p51 = scmp.ne.s32.totalorder %s40, %s41
    %p52 = scmp.eq.s32.totalorder %s18, 0
    %p53 = por %p51, %p52
    %p54 = scmp.ne.s32.totalorder %s40, %s41
    %p55 = scmp.eq.s32.totalorder %s19, 1
    %p56 = por %p54, %p55
    %p58 = scmp.ne.s32.totalorder %s41, %s57
    %p59 = scmp.eq.s32.totalorder %s19, 0
    %p60 = por %p58, %p59
    %s62 = sadd.s32 %s61, 1
    %p65 = scmp.eq.s32.totalorder %s13, 1
    %p66 = scmp.ne.s32.totalorder %s61, %s63
    %p67 = scmp.eq.s32.totalorder %s13, 0
    %p68 = por %p66, %p67
    %p69 = scmp.ne.s32.totalorder %s61, %s63
    %p70 = scmp.eq.s32.totalorder %s18, 1
    %p71 = por %p69, %p70
    %p72 = scmp.ne.s32.totalorder %s63, %s64
    %p73 = scmp.eq.s32.totalorder %s18, 0
    %p74 = por %p72, %p73
    %p75 = scmp.ne.s32.totalorder %s63, %s64
    %p76 = scmp.eq.s32.totalorder %s19, 1
    %p77 = por %p75, %p76
    %p79 = scmp.ne.s32.totalorder %s64, %s78
    %p80 = scmp.eq.s32.totalorder %s19, 0
    %p81 = por %p79, %p80
    %s83 = sadd.s32 %s82, 1
    %p86 = scmp.eq.s32.totalorder %s13, 1
    %p87 = scmp.ne.s32.totalorder %s82, %s84
    %p88 = scmp.eq.s32.totalorder %s13, 0
    %p89 = por %p87, %p88
    %p90 = scmp.ne.s32.totalorder %s82, %s84
    %p91 = scmp.eq.s32.totalorder %s18, 1
    %p92 = por %p90, %p91
    %p93 = scmp.ne.s32.totalorder %s84, %s85
    %p94 = scmp.eq.s32.totalorder %s18, 0
    %p95 = por %p93, %p94
    %p96 = scmp.ne.s32.totalorder %s84, %s85
    %p97 = scmp.eq.s32.totalorder %s19, 1
    %p98 = por %p96, %p97
    %p100 = scmp.ne.s32.totalorder %s85, %s99
    %p101 = scmp.eq.s32.totalorder %s19, 0
    %p102 = por %p100, %p101
    %s104 = sadd.s32 %s103, 1
    %p107 = scmp.eq.s32.totalorder %s13, 1
    %p108 = scmp.ne.s32.totalorder %s103, %s105
    %p109 = scmp.eq.s32.totalorder %s13, 0
    %p110 = por %p108, %p109
    %p111 = scmp.ne.s32.totalorder %s103, %s105
    %p112 = scmp.eq.s32.totalorder %s18, 1
    %p113 = por %p111, %p112
    %p114 = scmp.ne.s32.totalorder %s105, %s106
    %p115 = scmp.eq.s32.totalorder %s18, 0
    %p116 = por %p114, %p115
    %p117 = scmp.ne.s32.totalorder %s105, %s106
    %p118 = scmp.eq.s32.totalorder %s19, 1
    %p119 = por %p117, %p118
    %p121 = scmp.ne.s32.totalorder %s106, %s120
    %p122 = scmp.eq.s32.totalorder %s19, 0
    %p123 = por %p121, %p122
    %s125 = sadd.s32 %s124, 1
    %p128 = scmp.eq.s32.totalorder %s13, 1
    %p129 = scmp.ne.s32.totalorder %s124, %s126
    %p130 = scmp.eq.s32.totalorder %s13, 0
    %p131 = por %p129, %p130
    %p132 = scmp.ne.s32.totalorder %s124, %s126
    %p133 = scmp.eq.s32.totalorder %s18, 1
    %p134 = por %p132, %p133
    %p135 = scmp.ne.s32.totalorder %s126, %s127
    %p136 = scmp.eq.s32.totalorder %s18, 0
    %p137 = por %p135, %p136
    %p138 = scmp.ne.s32.totalorder %s126, %s127
    %p139 = scmp.eq.s32.totalorder %s19, 1
    %p140 = por %p138, %p139
    %p142 = scmp.ne.s32.totalorder %s127, %s141
    %p143 = scmp.eq.s32.totalorder %s19, 0
    %p144 = por %p142, %p143
    %s146 = sadd.s32 %s145, 1
    %p149 = scmp.eq.s32.totalorder %s13, 1
    %p150 = scmp.ne.s32.totalorder %s145, %s147
    %p151 = scmp.eq.s32.totalorder %s13, 0
    %p152 = por %p150, %p151
    %p153 = scmp.ne.s32.totalorder %s145, %s147
    %p154 = scmp.eq.s32.totalorder %s18, 1
    %p155 = por %p153, %p154
    %p156 = scmp.ne.s32.totalorder %s147, %s148
    %p157 = scmp.eq.s32.totalorder %s18, 0
    %p158 = por %p156, %p157
    %p159 = scmp.ne.s32.totalorder %s147, %s148
    %p160 = scmp.eq.s32.totalorder %s19, 1
    %p161 = por %p159, %p160
    %p163 = scmp.ne.s32.totalorder %s148, %s162
    %p164 = scmp.eq.s32.totalorder %s19, 0
    %p165 = por %p163, %p164
    %s167 = sadd.s32 %s166, 1
    %p170 = scmp.eq.s32.totalorder %s13, 1
    %p171 = scmp.ne.s32.totalorder %s166, %s168
    %p172 = scmp.eq.s32.totalorder %s13, 0
    %p173 = por %p171, %p172
    %p174 = scmp.ne.s32.totalorder %s166, %s168
    %p175 = scmp.eq.s32.totalorder %s18, 1
    %p176 = por %p174, %p175
    %p177 = scmp.ne.s32.totalorder %s168, %s169
    %p178 = scmp.eq.s32.totalorder %s18, 0
    %p179 = por %p177, %p178
    %p180 = scmp.ne.s32.totalorder %s168, %s169
    %p181 = scmp.eq.s32.totalorder %s19, 1
    %p182 = por %p180, %p181
    %p184 = scmp.ne.s32.totalorder %s169, %s183
    %p185 = scmp.eq.s32.totalorder %s19, 0
    %p186 = por %p184, %p185
    %s187 = ssub.s32 %s20, %s32
    %s188 = ssub.s32 %s21, %s28
    %s189 = sor.u32 %s187, %s188
    %p190 = scmp.eq.s32.totalorder %s189, 0
    %s192 = sadd.s32 %s191, 1
    %s193 = scalar_select %p190, %s191, %s192
    %p196 = pneg %p190
    %p197 = scmp.eq.s32.totalorder %s13, 1
    %p198 = por %p196, %p197
    %p199 = scmp.ne.s32.totalorder %s191, %s194
    %p200 = scmp.eq.s32.totalorder %s13, 0
    %p201 = por %p199, %p200
    %p202 = scmp.ne.s32.totalorder %s191, %s194
    %p203 = scmp.eq.s32.totalorder %s18, 1
    %p204 = por %p202, %p203
    %p205 = scmp.ne.s32.totalorder %s194, %s195
    %p206 = scmp.eq.s32.totalorder %s18, 0
    %p207 = por %p205, %p206
    %p208 = scmp.ne.s32.totalorder %s194, %s195
    %p209 = scmp.eq.s32.totalorder %s19, 1
    %p210 = por %p208, %p209
    %p212 = scmp.ne.s32.totalorder %s195, %s211
    %p213 = scmp.eq.s32.totalorder %s19, 0
    %p214 = por %p212, %p213
    %p215 = scmp.le.s32.totalorder 1, %s13
    %p216 = scmp.lt.s32.totalorder %s13, 3
    %p217 = pnand %p215, %p216
    %p218 = pneg %p217
    // Predicated region
    $region9: #{transformer_forward.4} parent=5 // pred_check
      _
    $region10: #{transformer_forward.4} parent=5 // pred_check_branch
      %220 = sbr.rel (%p217) target = $region12
    $region11: #{transformer_forward.4} parent=5 // pred_region
      %s221 = ssub.s32 %s13, 1
      // Predicated region
      $region13: #{transformer_forward.4} parent=11 // pred_check
        %p222 = pneg %p74
      $region14: #{transformer_forward.4} parent=11 // pred_check_branch
        %224 = sbr.rel (%p222) target = $region16
      $region15: #{transformer_forward.4} parent=11 // pred_region
        _
      $region16: #{transformer_forward.4} parent=11 // pred_fallthru
        _
      // Predicated region
      $region17: #{transformer_forward.4} parent=11 // pred_check
        %p225 = pneg %p95
      $region18: #{transformer_forward.4} parent=11 // pred_check_branch
        %227 = sbr.rel (%p225) target = $region20
      $region19: #{transformer_forward.4} parent=11 // pred_region
        _
      $region20: #{transformer_forward.4} parent=11 // pred_fallthru
        _
      // Predicated region
      $region21: #{transformer_forward.4} parent=11 // pred_check
        %p228 = pneg %p116
      $region22: #{transformer_forward.4} parent=11 // pred_check_branch
        %230 = sbr.rel (%p228) target = $region24
      $region23: #{transformer_forward.4} parent=11 // pred_region
        _
      $region24: #{transformer_forward.4} parent=11 // pred_fallthru
        _
      // Predicated region
      $region25: #{transformer_forward.4} parent=11 // pred_check
        %p231 = pneg %p137
      $region26: #{transformer_forward.4} parent=11 // pred_check_branch
        %233 = sbr.rel (%p231) target = $region28
      $region27: #{transformer_forward.4} parent=11 // pred_region
        _
      $region28: #{transformer_forward.4} parent=11 // pred_fallthru
        _
      // Predicated region
      $region29: #{transformer_forward.4} parent=11 // pred_check
        %p234 = pneg %p158
      $region30: #{transformer_forward.4} parent=11 // pred_check_branch
        %236 = sbr.rel (%p234) target = $region32
      $region31: #{transformer_forward.4} parent=11 // pred_region
        _
      $region32: #{transformer_forward.4} parent=11 // pred_fallthru
        _
      // Predicated region
      $region33: #{transformer_forward.4} parent=11 // pred_check
        %p237 = pneg %p179
      $region34: #{transformer_forward.4} parent=11 // pred_check_branch
        %239 = sbr.rel (%p237) target = $region36
      $region35: #{transformer_forward.4} parent=11 // pred_region
        _
      $region36: #{transformer_forward.4} parent=11 // pred_fallthru
        _
    $region12: #{transformer_forward.4} parent=5 // pred_fallthru
      _
    %p240 = scmp.lt.s32.totalorder %s13, 2
    // Predicated region
    $region37: #{transformer_forward.4} parent=5 // pred_check
      %p241 = pneg %p240
    $region38: #{transformer_forward.4} parent=5 // pred_check_branch
      %243 = sbr.rel (%p241) target = $region40
    $region39: #{transformer_forward.4} parent=5 // pred_region
      // Predicated region
      $region41: #{transformer_forward.4} parent=39 // pred_check
        %p244 = pneg %p47
      $region42: #{transformer_forward.4} parent=39 // pred_check_branch
        %246 = sbr.rel (%p244) target = $region44
      $region43: #{transformer_forward.4} parent=39 // pred_region
        %p247 = scmp.lt.s32.totalorder %s20, 1
        %s248 = scalar_select %p247, %s20, 1
        %p249 = scmp.lt.s32.totalorder %s21, 0
        %s250 = scalar_select %p249, %s21, 0
        %s251 = sadd.s32 %s250, %s248
        %s252 = smul.addr %s251, 8
        %s253 = scalar_lea.vmem %s0, %s252
      $region44: #{transformer_forward.4} parent=39 // pred_fallthru
        _
    $region40: #{transformer_forward.4} parent=5 // pred_fallthru
      _
    %p254 = scmp.le.s32.totalorder 1, %s13
    %p255 = scmp.lt.s32.totalorder %s13, 3
    %p256 = pnand %p254, %p255
    %p257 = pneg %p256
    // Predicated region
    $region45: #{transformer_forward.4} parent=5 // pred_check
      _
    $region46: #{transformer_forward.4} parent=5 // pred_check_branch
      %259 = sbr.rel (%p256) target = $region48
    $region47: #{transformer_forward.4} parent=5 // pred_region
      %s260 = ssub.s32 %s13, 1
      %p261 = scmp.lt.s32.totalorder %s22, 1
      %s262 = scalar_select %p261, %s22, 1
      %p263 = scmp.lt.s32.totalorder %s23, 0
      %s264 = scalar_select %p263, %s23, 0
      %s265 = sadd.s32 %s264, %s262
      %s266 = smul.addr %s265, 8
      %s267 = scalar_lea.vmem %s0, %s266
      %p268 = pneg %p53
      %p269 = pneg %p50
      %p270 = pneg %p74
      %p271 = pneg %p71
      %p272 = pneg %p95
      %p273 = pneg %p92
      %p274 = pneg %p116
      %p275 = pneg %p113
      %p276 = pneg %p137
      %p277 = pneg %p134
      %p278 = pneg %p158
      %p279 = pneg %p155
      %p280 = pneg %p179
      %p281 = pneg %p176
      %p282 = pneg %p207
      %p283 = pneg %p204
      %p284 = scmp.lt.s32.totalorder %s22, 1
      %s285 = scalar_select %p284, %s22, 1
      %p286 = scmp.lt.s32.totalorder %s23, 0
      %s287 = scalar_select %p286, %s23, 0
      %s288 = sadd.s32 %s287, %s285
      %s289 = smul.addr %s288, 8
      %s290 = scalar_lea.vmem %s7, %s289
      %p291 = scmp.lt.s32.totalorder %s22, 1
      %s292 = scalar_select %p291, %s22, 1
      %p293 = scmp.lt.s32.totalorder %s23, 0
      %s294 = scalar_select %p293, %s23, 0
      %s295 = sadd.s32 %s294, %s292
      %s296 = smul.addr %s295, 8
      %s297 = scalar_lea.vmem %s0, %s296
      %p298 = scmp.lt.s32.totalorder %s22, 1
      %s299 = scalar_select %p298, %s22, 1
      %p300 = scmp.lt.s32.totalorder %s23, 0
      %s301 = scalar_select %p300, %s23, 0
      %s302 = sadd.s32 %s301, %s299
      %s303 = smul.addr %s302, 8
      %s304 = scalar_lea.vmem %s7, %s303
      %v305 = vld [vmem:[%s297] sm:$0xff]
      %v306 = vrot.slane %v305, 4
      %v307 = vadd.f32 %v305, %v306
      %v308 = vrot.slane %v307, 2
      %v309 = vadd.f32 %v307, %v308
      %v310 = vrot.slane %v309, 1
      %v311 = vadd.f32 %v309, %v310
      %v312 = vmul.f32 %v311, 0.125
      %v313 = vsub.f32 %v305, %v312
      %v314 = vmul.f32 %v313, %v313
      %v315 = vrot.slane %v314, 4
      %v316 = vadd.f32 %v314, %v315
      %v317 = vrot.slane %v316, 2
      %v318 = vadd.f32 %v316, %v317
      %v319 = vrot.slane %v318, 1
      %v320 = vadd.f32 %v318, %v319
      %v321 = vmul.f32 %v320, 0.125
      %v322 = vadd.f32 %v321, 1e-05
      %v323 = vrsqrt.pop %v322
      %v324 = vmul.f32 %v313, %v323
      %v325 = vld [vmem:[%s1] sm:$0xff]
      %327 = vset.pattern.permute.xlu0 0
      %328 = vperm.xlu0 %327, %v325
      %v329 = vpop.permute.xlu0 %328
      %v331 = vmul.f32 %v324, %v329
      %v332 = vld [vmem:[%s2] sm:$0xff]
      %334 = vset.pattern.permute.xlu0 0
      %335 = vperm.xlu0 %334, %v332
      %v336 = vpop.permute.xlu0 %335
      %v338 = vadd.f32 %v331, %v336
      %v339 = vld [vmem:[%s3] sm:$0xff]
      %v340 = vld [vmem:[%s3 + $0x8] sm:$0xff]
      %v341 = vld [vmem:[%s3 + $0x10] sm:$0xff]
      %v342 = vld [vmem:[%s3 + $0x18] sm:$0xff]
      %v343 = vld [vmem:[%s3 + $0x20] sm:$0xff]
      %v344 = vld [vmem:[%s3 + $0x28] sm:$0xff]
      %v345 = vld [vmem:[%s3 + $0x30] sm:$0xff]
      %v346 = vld [vmem:[%s3 + $0x38] sm:$0xff]
      %v347 = vld [vmem:[%s3 + $0x40] sm:$0xff]
      %v348 = vld [vmem:[%s3 + $0x48] sm:$0xff]
      %v349 = vld [vmem:[%s3 + $0x50] sm:$0xff]
      %v350 = vld [vmem:[%s3 + $0x58] sm:$0xff]
      %v351 = vld [vmem:[%s3 + $0x60] sm:$0xff]
      %v352 = vld [vmem:[%s3 + $0x68] sm:$0xff]
      %v353 = vld [vmem:[%s3 + $0x70] sm:$0xff]
      %v354 = vld [vmem:[%s3 + $0x78] sm:$0xff]
      %v355 = vld [vmem:[%s4] sm:$0xff]
      %v356 = vld [vmem:[%s4 + $0x8] sm:$0xff]
      %v357 = vld [vmem:[%s4 + $0x10] sm:$0xff]
      %v358 = vld [vmem:[%s4 + $0x18] sm:$0xff]
      %v359 = vld [vmem:[%s4 + $0x20] sm:$0xff]
      %v360 = vld [vmem:[%s4 + $0x28] sm:$0xff]
      %v361 = vld [vmem:[%s4 + $0x30] sm:$0xff]
      %v362 = vld [vmem:[%s4 + $0x38] sm:$0xff]
      %v363 = vld [vmem:[%s4 + $0x40] sm:$0xff]
      %v364 = vld [vmem:[%s4 + $0x48] sm:$0xff]
      %v365 = vld [vmem:[%s4 + $0x50] sm:$0xff]
      %v366 = vld [vmem:[%s4 + $0x58] sm:$0xff]
      %v367 = vld [vmem:[%s4 + $0x60] sm:$0xff]
      %v368 = vld [vmem:[%s4 + $0x68] sm:$0xff]
      %v369 = vld [vmem:[%s4 + $0x70] sm:$0xff]
      %v370 = vld [vmem:[%s4 + $0x78] sm:$0xff]
      %372 = vset.pattern.permute.xlu0 0
      %373 = vperm.xlu0 %372, %v355
      %v374 = vpop.permute.xlu0 %373
      %377 = vset.pattern.permute.xlu0 0
      %378 = vperm.xlu0 %377, %v356
      %v379 = vpop.permute.xlu0 %378
      %382 = vset.pattern.permute.xlu0 0
      %383 = vperm.xlu0 %382, %v357
      %v384 = vpop.permute.xlu0 %383
      %387 = vset.pattern.permute.xlu0 0
      %388 = vperm.xlu0 %387, %v358
      %v389 = vpop.permute.xlu0 %388
      %392 = vset.pattern.permute.xlu0 0
      %393 = vperm.xlu0 %392, %v359
      %v394 = vpop.permute.xlu0 %393
      %397 = vset.pattern.permute.xlu0 0
      %398 = vperm.xlu0 %397, %v360
      %v399 = vpop.permute.xlu0 %398
      %402 = vset.pattern.permute.xlu0 0
      %403 = vperm.xlu0 %402, %v361
      %v404 = vpop.permute.xlu0 %403
      %407 = vset.pattern.permute.xlu0 0
      %408 = vperm.xlu0 %407, %v362
      %v409 = vpop.permute.xlu0 %408
      %412 = vset.pattern.permute.xlu0 0
      %413 = vperm.xlu0 %412, %v363
      %v414 = vpop.permute.xlu0 %413
      %417 = vset.pattern.permute.xlu0 0
      %418 = vperm.xlu0 %417, %v364
      %v419 = vpop.permute.xlu0 %418
      %422 = vset.pattern.permute.xlu0 0
      %423 = vperm.xlu0 %422, %v365
      %v424 = vpop.permute.xlu0 %423
      %427 = vset.pattern.permute.xlu0 0
      %428 = vperm.xlu0 %427, %v366
      %v429 = vpop.permute.xlu0 %428
      %432 = vset.pattern.permute.xlu0 0
      %433 = vperm.xlu0 %432, %v367
      %v434 = vpop.permute.xlu0 %433
      %437 = vset.pattern.permute.xlu0 0
      %438 = vperm.xlu0 %437, %v368
      %v439 = vpop.permute.xlu0 %438
      %442 = vset.pattern.permute.xlu0 0
      %443 = vperm.xlu0 %442, %v369
      %v444 = vpop.permute.xlu0 %443
      %447 = vset.pattern.permute.xlu0 0
      %448 = vperm.xlu0 %447, %v370
      %v449 = vpop.permute.xlu0 %448
      %vm451 = vcmask 64512
      %v453 = vsel %vm451, %v339, 0
      %v456 = vsel %vm451, %v340, 0
      %v459 = vsel %vm451, %v341, 0
      %v462 = vsel %vm451, %v342, 0
      %v465 = vsel %vm451, %v343, 0
      %v468 = vsel %vm451, %v344, 0
      %v471 = vsel %vm451, %v345, 0
      %v474 = vsel %vm451, %v346, 0
      %v477 = vsel %vm451, %v347, 0
      %v480 = vsel %vm451, %v348, 0
      %v483 = vsel %vm451, %v349, 0
      %v486 = vsel %vm451, %v350, 0
      %v489 = vsel %vm451, %v351, 0
      %v492 = vsel %vm451, %v352, 0
      %v495 = vsel %vm451, %v353, 0
      %v498 = vsel %vm451, %v354, 0
      %500 = vmatprep.subr.mxu0 0.0
      %501 = vmatpush1.msra.mxu0 %v338
      %502 = vmatprep.subr.mxu0 0.0
      %503 = vmatpush1.msra.mxu0 0.0
      %504 = vmatprep.subr.mxu0 0.0
      %505 = vmatpush1.msra.mxu0 0.0
      %506 = vmatprep.subr.mxu0 0.0
      %507 = vmatpush1.msra.mxu0 0.0
      %508 = vmatprep.subr.mxu0 0.0
      %509 = vmatpush1.msra.mxu0 0.0
      %510 = vmatprep.subr.mxu0 0.0
      %511 = vmatpush1.msra.mxu0 0.0
      %512 = vmatprep.subr.mxu0 0.0
      %513 = vmatpush1.msra.mxu0 0.0
      %514 = vmatprep.subr.mxu0 0.0
      %515 = vmatpush1.msra.mxu0 0.0
      %516 = vmatprep.subr.mxu0 0.0
      %517 = vmatpush1.msra.mxu0 0.0
      %518 = vmatprep.subr.mxu0 0.0
      %519 = vmatpush1.msra.mxu0 0.0
      %520 = vmatprep.subr.mxu0 0.0
      %521 = vmatpush1.msra.mxu0 0.0
      %522 = vmatprep.subr.mxu0 0.0
      %523 = vmatpush1.msra.mxu0 0.0
      %524 = vmatprep.subr.mxu0 0.0
      %525 = vmatpush1.msra.mxu0 0.0
      %526 = vmatprep.subr.mxu0 0.0
      %527 = vmatpush1.msra.mxu0 0.0
      %528 = vmatprep.subr.mxu0 0.0
      %529 = vmatpush1.msra.mxu0 0.0
      %530 = vmatprep.subr.mxu0 0.0
      %531 = vmatpush1.msra.mxu0 0.0
      %532 = vmatprep.subr.mxu0 0.0
      %533 = vmatpush1.msra.mxu0 0.0
      %534 = vmatprep.subr.mxu0 0.0
      %535 = vmatpush1.msra.mxu0 0.0
      %536 = vmatprep.subr.mxu0 0.0
      %537 = vmatpush1.msra.mxu0 0.0
      %538 = vmatprep.subr.mxu0 0.0
      %539 = vmatpush1.msra.mxu0 0.0
      %540 = vmatprep.subr.mxu0 0.0
      %541 = vmatpush1.msra.mxu0 0.0
      %542 = vmatprep.subr.mxu0 0.0
      %543 = vmatpush1.msra.mxu0 0.0
      %544 = vmatprep.subr.mxu0 0.0
      %545 = vmatpush1.msra.mxu0 0.0
      %546 = vmatprep.subr.mxu0 0.0
      %547 = vmatpush1.msra.mxu0 0.0
      %548 = vmatprep.subr.mxu0 0.0
      %549 = vmatpush1.msra.mxu0 0.0
      %550 = vmatprep.subr.mxu0 0.0
      %551 = vmatpush1.msra.mxu0 0.0
      %552 = vmatprep.subr.mxu0 0.0
      %553 = vmatpush1.msra.mxu0 0.0
      %554 = vmatprep.subr.mxu0 0.0
      %555 = vmatpush1.msra.mxu0 0.0
      %556 = vmatprep.subr.mxu0 0.0
      %557 = vmatpush1.msra.mxu0 0.0
      %558 = vmatprep.subr.mxu0 0.0
      %559 = vmatpush1.msra.mxu0 0.0
      %560 = vmatprep.subr.mxu0 0.0
      %561 = vmatpush1.msra.mxu0 0.0
      %562 = vmatprep.subr.mxu0 0.0
      %563 = vmatpush1.msra.mxu0 0.0
      %564 = vmatprep.mubr.f32.mxu0 0.0
      %565 = vmatmul.mubr.f32.gmra.mrb[0].mxu0 %v453
      %v566 = vpop.f32.mrb[0].mxu0
      %v567 = vadd.f32 %v374, %v566
      %v568 = vpop.f32.mrb[0].mxu0
      %569 = vmatprep.mubr.f32.mxu0 0.0
      %570 = vmatmul.mubr.f32.gmra.mrb[0].mxu0 %v456
      %v571 = vpop.f32.mrb[0].mxu0
      %v572 = vadd.f32 %v379, %v571
      %v573 = vpop.f32.mrb[0].mxu0
      %574 = vmatprep.mubr.f32.mxu0 0.0
      %575 = vmatmul.mubr.f32.gmra.mrb[0].mxu0 %v459
      %v576 = vpop.f32.mrb[0].mxu0
      %v577 = vadd.f32 %v384, %v576
      %v578 = vpop.f32.mrb[0].mxu0
      %579 = vmatprep.mubr.f32.mxu0 0.0
      %580 = vmatmul.mubr.f32.gmra.mrb[0].mxu0 %v462
      %v581 = vpop.f32.mrb[0].mxu0
      %v582 = vadd.f32 %v389, %v581
      %v583 = vpop.f32.mrb[0].mxu0
      %584 = vmatprep.mubr.f32.mxu0 0.0
      %585 = vmatmul.mubr.f32.gmra.mrb[0].mxu0 %v465
      %v586 = vpop.f32.mrb[0].mxu0
      %v587 = vadd.f32 %v394, %v586
      %v588 = vpop.f32.mrb[0].mxu0
      %589 = vmatprep.mubr.f32.mxu0 0.0
      %590 = vmatmul.mubr.f32.gmra.mrb[0].mxu0 %v468
      %v591 = vpop.f32.mrb[0].mxu0
      %v592 = vadd.f32 %v399, %v591
      %v593 = vpop.f32.mrb[0].mxu0
      %594 = vmatprep.mubr.f32.mxu0 0.0
      %595 = vmatmul.mubr.f32.gmra.mrb[0].mxu0 %v471
      %v596 = vpop.f32.mrb[0].mxu0
      %v597 = vadd.f32 %v404, %v596
      %v598 = vpop.f32.mrb[0].mxu0
      %599 = vmatprep.mubr.f32.mxu0 0.0
      %600 = vmatmul.mubr.f32.gmra.mrb[0].mxu0 %v474
      %v601 = vpop.f32.mrb[0].mxu0
      %v602 = vadd.f32 %v409, %v601
      %v603 = vpop.f32.mrb[0].mxu0
      %604 = vmatprep.mubr.f32.mxu0 0.0
      %605 = vmatmul.mubr.f32.gmra.mrb[0].mxu0 %v477
      %v606 = vpop.f32.mrb[0].mxu0
      %v607 = vadd.f32 %v414, %v606
      %v608 = vpop.f32.mrb[0].mxu0
      %609 = vmatprep.mubr.f32.mxu0 0.0
      %610 = vmatmul.mubr.f32.gmra.mrb[0].mxu0 %v480
      %v611 = vpop.f32.mrb[0].mxu0
      %v612 = vadd.f32 %v419, %v611
      %v613 = vpop.f32.mrb[0].mxu0
      %614 = vmatprep.mubr.f32.mxu0 0.0
      %615 = vmatmul.mubr.f32.gmra.mrb[0].mxu0 %v483
      %v616 = vpop.f32.mrb[0].mxu0
      %v617 = vadd.f32 %v424, %v616
      %v618 = vpop.f32.mrb[0].mxu0
      %619 = vmatprep.mubr.f32.mxu0 0.0
      %620 = vmatmul.mubr.f32.gmra.mrb[0].mxu0 %v486
      %v621 = vpop.f32.mrb[0].mxu0
      %v622 = vadd.f32 %v429, %v621
      %v623 = vpop.f32.mrb[0].mxu0
      %624 = vmatprep.mubr.f32.mxu0 0.0
      %625 = vmatmul.mubr.f32.gmra.mrb[0].mxu0 %v489
      %v626 = vpop.f32.mrb[0].mxu0
      %v627 = vadd.f32 %v434, %v626
      %v628 = vpop.f32.mrb[0].mxu0
      %629 = vmatprep.mubr.f32.mxu0 0.0
      %630 = vmatmul.mubr.f32.gmra.mrb[0].mxu0 %v492
      %v631 = vpop.f32.mrb[0].mxu0
      %v632 = vadd.f32 %v439, %v631
      %v633 = vpop.f32.mrb[0].mxu0
      %634 = vmatprep.mubr.f32.mxu0 0.0
      %635 = vmatmul.mubr.f32.gmra.mrb[0].mxu0 %v495
      %v636 = vpop.f32.mrb[0].mxu0
      %v637 = vadd.f32 %v444, %v636
      %v638 = vpop.f32.mrb[0].mxu0
      %639 = vmatprep.mubr.f32.mxu0 0.0
      %640 = vmatmul.mubr.f32.gmra.mrb[0].mxu0 %v498
      %v641 = vpop.f32.mrb[0].mxu0
      %v642 = vadd.f32 %v449, %v641
      %v643 = vpop.f32.mrb[0].mxu0
      %644 = vdwg.mxu0
      %v645 = vmul.f32 %v567, 0.5
      %v646 = vmul.f32 %v572, 0.5
      %v647 = vmul.f32 %v577, 0.5
      %v648 = vmul.f32 %v582, 0.5
      %v649 = vmul.f32 %v587, 0.5
      %v650 = vmul.f32 %v592, 0.5
      %v651 = vmul.f32 %v597, 0.5
      %v652 = vmul.f32 %v602, 0.5
      %v653 = vmul.f32 %v607, 0.5
      %v654 = vmul.f32 %v612, 0.5
      %v655 = vmul.f32 %v617, 0.5
      %v656 = vmul.f32 %v622, 0.5
      %v657 = vmul.f32 %v627, 0.5
      %v658 = vmul.f32 %v632, 0.5
      %v659 = vmul.f32 %v637, 0.5
      %v660 = vmul.f32 %v642, 0.5
      %v661 = vmul.f32 %v567, 0.70710677
      %v662 = vmul.f32 %v572, 0.70710677
      %v663 = vmul.f32 %v577, 0.70710677
      %v664 = vmul.f32 %v582, 0.70710677
      %v665 = vmul.f32 %v587, 0.70710677
      %v666 = vmul.f32 %v592, 0.70710677
      %v667 = vmul.f32 %v597, 0.70710677
      %v668 = vmul.f32 %v602, 0.70710677
      %v669 = vmul.f32 %v607, 0.70710677
      %v670 = vmul.f32 %v612, 0.70710677
      %v671 = vmul.f32 %v617, 0.70710677
      %v672 = vmul.f32 %v622, 0.70710677
      %v673 = vmul.f32 %v627, 0.70710677
      %v674 = vmul.f32 %v632, 0.70710677
      %v675 = vmul.f32 %v637, 0.70710677
      %v676 = vmul.f32 %v642, 0.70710677
      %v677 = verf.f32.pop %v661
      %v678 = verf.f32.pop %v662
      %v679 = verf.f32.pop %v663
      %v680 = verf.f32.pop %v664
      %v681 = verf.f32.pop %v665
      %v682 = verf.f32.pop %v666
      %v683 = verf.f32.pop %v667
      %v684 = verf.f32.pop %v668
      %v685 = verf.f32.pop %v669
      %v686 = verf.f32.pop %v670
      %v687 = verf.f32.pop %v671
      %v688 = verf.f32.pop %v672
      %v689 = verf.f32.pop %v673
      %v690 = verf.f32.pop %v674
      %v691 = verf.f32.pop %v675
      %v692 = verf.f32.pop %v676
      %v693 = vadd.f32 %v677, 1.0
      %v694 = vadd.f32 %v678, 1.0
      %v695 = vadd.f32 %v679, 1.0
      %v696 = vadd.f32 %v680, 1.0
      %v697 = vadd.f32 %v681, 1.0
      %v698 = vadd.f32 %v682, 1.0
      %v699 = vadd.f32 %v683, 1.0
      %v700 = vadd.f32 %v684, 1.0
      %v701 = vadd.f32 %v685, 1.0
      %v702 = vadd.f32 %v686, 1.0
      %v703 = vadd.f32 %v687, 1.0
      %v704 = vadd.f32 %v688, 1.0
      %v705 = vadd.f32 %v689, 1.0
      %v706 = vadd.f32 %v690, 1.0
      %v707 = vadd.f32 %v691, 1.0
      %v708 = vadd.f32 %v692, 1.0
      %v709 = vmul.f32 %v645, %v693
      %v710 = vmul.f32 %v646, %v694
      %v711 = vmul.f32 %v647, %v695
      %v712 = vmul.f32 %v648, %v696
      %v713 = vmul.f32 %v649, %v697
      %v714 = vmul.f32 %v650, %v698
      %v715 = vmul.f32 %v651, %v699
      %v716 = vmul.f32 %v652, %v700
      %v717 = vmul.f32 %v653, %v701
      %v718 = vmul.f32 %v654, %v702
      %v719 = vmul.f32 %v655, %v703
      %v720 = vmul.f32 %v656, %v704
      %v721 = vmul.f32 %v657, %v705
      %v722 = vmul.f32 %v658, %v706
      %v723 = vmul.f32 %v659, %v707
      %v724 = vmul.f32 %v660, %v708
      %v725 = vld [vmem:[%s5] sm:$0xff]
      %v726 = vld [vmem:[%s6] sm:$0xff]
      %728 = vset.pattern.permute.xlu0 0
      %729 = vperm.xlu0 %728, %v726
      %v730 = vpop.permute.xlu0 %729
      %732 = vmatprep.subr.mxu0 0.0
      %733 = vmatpush1.msra.mxu0 %v709
      %734 = vmatprep.subr.mxu0 0.0
      %735 = vmatpush1.msra.mxu0 %v710
      %736 = vmatprep.subr.mxu0 0.0
      %737 = vmatpush1.msra.mxu0 %v711
      %738 = vmatprep.subr.mxu0 0.0
      %739 = vmatpush1.msra.mxu0 %v712
      %740 = vmatprep.subr.mxu0 0.0
      %741 = vmatpush1.msra.mxu0 %v713
      %742 = vmatprep.subr.mxu0 0.0
      %743 = vmatpush1.msra.mxu0 %v714
      %744 = vmatprep.subr.mxu0 0.0
      %745 = vmatpush1.msra.mxu0 %v715
      %746 = vmatprep.subr.mxu0 0.0
      %747 = vmatpush1.msra.mxu0 %v716
      %748 = vmatprep.subr.mxu0 0.0
      %749 = vmatpush1.msra.mxu0 %v717
      %750 = vmatprep.subr.mxu0 0.0
      %751 = vmatpush1.msra.mxu0 %v718
      %752 = vmatprep.subr.mxu0 0.0
      %753 = vmatpush1.msra.mxu0 %v719
      %754 = vmatprep.subr.mxu0 0.0
      %755 = vmatpush1.msra.mxu0 %v720
      %756 = vmatprep.subr.mxu0 0.0
      %757 = vmatpush1.msra.mxu0 %v721
      %758 = vmatprep.subr.mxu0 0.0
      %759 = vmatpush1.msra.mxu0 %v722
      %760 = vmatprep.subr.mxu0 0.0
      %761 = vmatpush1.msra.mxu0 %v723
      %762 = vmatprep.subr.mxu0 0.0
      %763 = vmatpush1.msra.mxu0 %v724
      %764 = vmatprep.subr.mxu0 0.0
      %765 = vmatpush1.msra.mxu0 0.0
      %766 = vmatprep.subr.mxu0 0.0
      %767 = vmatpush1.msra.mxu0 0.0
      %768 = vmatprep.subr.mxu0 0.0
      %769 = vmatpush1.msra.mxu0 0.0
      %770 = vmatprep.subr.mxu0 0.0
      %771 = vmatpush1.msra.mxu0 0.0
      %772 = vmatprep.subr.mxu0 0.0
      %773 = vmatpush1.msra.mxu0 0.0
      %774 = vmatprep.subr.mxu0 0.0
      %775 = vmatpush1.msra.mxu0 0.0
      %776 = vmatprep.subr.mxu0 0.0
      %777 = vmatpush1.msra.mxu0 0.0
      %778 = vmatprep.subr.mxu0 0.0
      %779 = vmatpush1.msra.mxu0 0.0
      %780 = vmatprep.subr.mxu0 0.0
      %781 = vmatpush1.msra.mxu0 0.0
      %782 = vmatprep.subr.mxu0 0.0
      %783 = vmatpush1.msra.mxu0 0.0
      %784 = vmatprep.subr.mxu0 0.0
      %785 = vmatpush1.msra.mxu0 0.0
      %786 = vmatprep.subr.mxu0 0.0
      %787 = vmatpush1.msra.mxu0 0.0
      %788 = vmatprep.subr.mxu0 0.0
      %789 = vmatpush1.msra.mxu0 0.0
      %790 = vmatprep.subr.mxu0 0.0
      %791 = vmatpush1.msra.mxu0 0.0
      %792 = vmatprep.subr.mxu0 0.0
      %793 = vmatpush1.msra.mxu0 0.0
      %794 = vmatprep.subr.mxu0 0.0
      %795 = vmatpush1.msra.mxu0 0.0
      %796 = vmatprep.mubr.f32.mxu0 0.0
      %797 = vmatmul.mubr.f32.gmra.mrb[0].mxu0 %v725
      %v798 = vpop.f32.mrb[0].mxu0
      %v799 = vadd.f32 %v730, %v798
      %v800 = vpop.f32.mrb[0].mxu0
      %801 = vdwg.mxu0
      %v802 = vadd.f32 %v305, %v799
      %803 = vst [vmem:[%s304] sm:$0xff] %v802
      %p804 = scmp.lt.s32.totalorder %s22, 1
      %s805 = scalar_select %p804, %s22, 1
      %p806 = scmp.lt.s32.totalorder %s23, 0
      %s807 = scalar_select %p806, %s23, 0
      %s808 = sadd.s32 %s807, %s805
      %s809 = smul.addr %s808, 8
      %s810 = scalar_lea.vmem %s7, %s809
      // Predicated region
      $region49: #{transformer_forward.4} parent=47 // pred_check
        %p811 = pneg %p204
      $region50: #{transformer_forward.4} parent=47 // pred_check_branch
        %813 = sbr.rel (%p811) target = $region52
      $region51: #{transformer_forward.4} parent=47 // pred_region
        _
      $region52: #{transformer_forward.4} parent=47 // pred_fallthru
        _
    $region48: #{transformer_forward.4} parent=5 // pred_fallthru
      _
    %p814 = scmp.le.s32.totalorder 2, %s13
    // Predicated region
    $region53: #{transformer_forward.4} parent=5 // pred_check
      %p815 = pneg %p814
    $region54: #{transformer_forward.4} parent=5 // pred_check_branch
      %817 = sbr.rel (%p815) target = $region56
    $region55: #{transformer_forward.4} parent=5 // pred_region
      %s818 = ssub.s32 %s13, 2
      // Predicated region
      $region57: #{transformer_forward.4} parent=55 // pred_check
        %p819 = pneg %p210
      $region58: #{transformer_forward.4} parent=55 // pred_check_branch
        %821 = sbr.rel (%p819) target = $region60
      $region59: #{transformer_forward.4} parent=55 // pred_region
        %p822 = scmp.lt.s32.totalorder %s24, 1
        %s823 = scalar_select %p822, %s24, 1
        %p824 = scmp.lt.s32.totalorder %s25, 0
        %s825 = scalar_select %p824, %s25, 0
        %s826 = sadd.s32 %s825, %s823
        %s827 = smul.addr %s826, 8
        %s828 = scalar_lea.vmem %s7, %s827
      $region60: #{transformer_forward.4} parent=55 // pred_fallthru
        _
    $region56: #{transformer_forward.4} parent=5 // pred_fallthru
      _
  $region6: #{transformer_forward.4} parent=0 // loop_footer
    %s17 = sadd.s32 1, %s13
  $region7: #{transformer_forward.4} parent=0 // loop_footer_branch
    %12 = sbr.rel target = $region3
  $region8: #{transformer_forward.4} parent=0 // loop_exit
    _

// kernel: transformer_forward.5
$region0: #{transformer_forward.5}
  #allocation0 [shape = 'u32[]', space=smem, size = 0x4, offset = 0x4, fixed_abs, tag = 'smem constant byte address 0x4 - core index']
  #allocation1 [shape = 'u32[144,128]{1,0:T(1,128)}', space=vmem, size = 0x12000, scoped, tag = 'internal scratch']
  #allocation2 [shape = 'f32[8,128]{1,0:T(8,128)}', space=vmem, size = 0x1000, scoped, tag = 'scratch operand']
  #allocation3 [shape = 'f32[8,128]{1,0:T(8,128)}', space=vmem, size = 0x1000, scoped, tag = 'scratch operand']
  %s0 = inlined_call_operand.vmem [shape: f32[16,128], index: 0, kind: input, shape index: {}, may-alias: {0,7}]
  %s1 = inlined_call_operand.vmem [shape: f32[1,128], index: 1, kind: input, shape index: {}]
  %s2 = inlined_call_operand.vmem [shape: f32[1,128], index: 2, kind: input, shape index: {}]
  %s3 = inlined_call_operand.vmem [shape: f32[128,128], index: 3, kind: input, shape index: {}]
  %s4 = inlined_call_operand.vmem [shape: f32[1,128], index: 4, kind: input, shape index: {}]
  %s5 = inlined_call_operand.vmem [shape: f32[128,128], index: 5, kind: input, shape index: {}]
  %s6 = inlined_call_operand.vmem [shape: f32[1,128], index: 6, kind: input, shape index: {}]
  %s7 = inlined_call_operand.vmem [shape: f32[16,128], index: 7, kind: output, shape index: {}, may-alias: {0,7}]
  %s8 = sld [smem:[#allocation0]]
  $region69: #{transformer_forward.5} parent=0
    _
  %s10 = ssub.s32 1, %s8
  %s11 = scalar_select 0, %s10, %s8
  loop: start=0, step=1, limit=4
  $region2: #{transformer_forward.5} parent=0 // loop_pre_header
    _
  $region3: #{transformer_forward.5} parent=0 // loop_header
    %s13 = sphi 0, %s17
    %p14 = scmp.ge.s32.totalorder %s13, 4
    %s20 = sphi 0, %s32
    %s21 = sphi 0, %s28
    %s22 = sphi 0, %s20
    %s23 = sphi 0, %s21
    %s24 = sphi 0, %s22
    %s25 = sphi 0, %s23
    %s35 = sphi 0, %s37
    %s38 = sphi 0, %s35
    %s39 = sphi 0, %s38
    %s55 = sphi 0, %s39
    %s59 = sphi 0, %s59
    %s61 = sphi 0, %s59
    %s62 = sphi 0, %s61
    %s76 = sphi 0, %s62
    %s80 = sphi 0, %s80
    %s82 = sphi 0, %s80
    %s83 = sphi 0, %s82
    %s97 = sphi 0, %s83
    %s103 = sphi 0, %s105
    %s106 = sphi 0, %s103
    %s107 = sphi 0, %s106
    %s123 = sphi 0, %s107
    %s129 = sphi 0, %s131
    %s132 = sphi 0, %s129
    %s133 = sphi 0, %s132
    %s149 = sphi 0, %s133
    %s155 = sphi 0, %s157
    %s158 = sphi 0, %s155
    %s159 = sphi 0, %s158
    %s175 = sphi 0, %s159
    %s179 = sphi 0, %s179
    %s181 = sphi 0, %s179
    %s182 = sphi 0, %s181
    %s196 = sphi 0, %s182
    %s202 = sphi 0, %s204
    %s205 = sphi 0, %s202
    %s206 = sphi 0, %s205
    %s222 = sphi 0, %s206
  $region4: #{transformer_forward.5} parent=0 // loop_header_branch
    %16 = sbr.rel (%p14) target = $region8
  $region5: #{transformer_forward.5} parent=0 // loop_body
    %s18 = ssub.s32 %s13, 1
    %s19 = ssub.s32 %s13, 2
    %s26 = sadd.s32 1, %s21
    %p27 = scmp.ge.s32.totalorder %s26, 1
    %s28 = scalar_select %p27, 0, %s26
    %s29 = sadd.s32 1, %s20
    %s30 = scalar_select %p27, %s29, %s20
    %p31 = scmp.ge.s32.totalorder %s30, 2
    %s32 = scalar_select %p31, 0, %s30
    %s33 = ssub.s32 %s20, %s32
    %p34 = scmp.eq.s32.totalorder %s33, 0
    %s36 = sadd.s32 %s35, 1
    %s37 = scalar_select %p34, %s35, %s36
    %p40 = pneg %p34
    %p41 = scmp.eq.s32.totalorder %s13, 1
    %p42 = por %p40, %p41
    %p43 = scmp.ne.s32.totalorder %s35, %s38
    %p44 = scmp.eq.s32.totalorder %s13, 0
    %p45 = por %p43, %p44
    %p46 = scmp.ne.s32.totalorder %s35, %s38
    %p47 = scmp.eq.s32.totalorder %s18, 1
    %p48 = por %p46, %p47
    %p49 = scmp.ne.s32.totalorder %s38, %s39
    %p50 = scmp.eq.s32.totalorder %s18, 0
    %p51 = por %p49, %p50
    %p52 = scmp.ne.s32.totalorder %s38, %s39
    %p53 = scmp.eq.s32.totalorder %s19, 1
    %p54 = por %p52, %p53
    %p56 = scmp.ne.s32.totalorder %s39, %s55
    %p57 = scmp.eq.s32.totalorder %s19, 0
    %p58 = por %p56, %p57
    %s60 = sadd.s32 %s59, 1
    %p63 = scmp.eq.s32.totalorder %s13, 1
    %p64 = scmp.ne.s32.totalorder %s59, %s61
    %p65 = scmp.eq.s32.totalorder %s13, 0
    %p66 = por %p64, %p65
    %p67 = scmp.ne.s32.totalorder %s59, %s61
    %p68 = scmp.eq.s32.totalorder %s18, 1
    %p69 = por %p67, %p68
    %p70 = scmp.ne.s32.totalorder %s61, %s62
    %p71 = scmp.eq.s32.totalorder %s18, 0
    %p72 = por %p70, %p71
    %p73 = scmp.ne.s32.totalorder %s61, %s62
    %p74 = scmp.eq.s32.totalorder %s19, 1
    %p75 = por %p73, %p74
    %p77 = scmp.ne.s32.totalorder %s62, %s76
    %p78 = scmp.eq.s32.totalorder %s19, 0
    %p79 = por %p77, %p78
    %s81 = sadd.s32 %s80, 1
    %p84 = scmp.eq.s32.totalorder %s13, 1
    %p85 = scmp.ne.s32.totalorder %s80, %s82
    %p86 = scmp.eq.s32.totalorder %s13, 0
    %p87 = por %p85, %p86
    %p88 = scmp.ne.s32.totalorder %s80, %s82
    %p89 = scmp.eq.s32.totalorder %s18, 1
    %p90 = por %p88, %p89
    %p91 = scmp.ne.s32.totalorder %s82, %s83
    %p92 = scmp.eq.s32.totalorder %s18, 0
    %p93 = por %p91, %p92
    %p94 = scmp.ne.s32.totalorder %s82, %s83
    %p95 = scmp.eq.s32.totalorder %s19, 1
    %p96 = por %p94, %p95
    %p98 = scmp.ne.s32.totalorder %s83, %s97
    %p99 = scmp.eq.s32.totalorder %s19, 0
    %p100 = por %p98, %p99
    %s101 = ssub.s32 %s21, %s28
    %p102 = scmp.eq.s32.totalorder %s101, 0
    %s104 = sadd.s32 %s103, 1
    %s105 = scalar_select %p102, %s103, %s104
    %p108 = pneg %p102
    %p109 = scmp.eq.s32.totalorder %s13, 1
    %p110 = por %p108, %p109
    %p111 = scmp.ne.s32.totalorder %s103, %s106
    %p112 = scmp.eq.s32.totalorder %s13, 0
    %p113 = por %p111, %p112
    %p114 = scmp.ne.s32.totalorder %s103, %s106
    %p115 = scmp.eq.s32.totalorder %s18, 1
    %p116 = por %p114, %p115
    %p117 = scmp.ne.s32.totalorder %s106, %s107
    %p118 = scmp.eq.s32.totalorder %s18, 0
    %p119 = por %p117, %p118
    %p120 = scmp.ne.s32.totalorder %s106, %s107
    %p121 = scmp.eq.s32.totalorder %s19, 1
    %p122 = por %p120, %p121
    %p124 = scmp.ne.s32.totalorder %s107, %s123
    %p125 = scmp.eq.s32.totalorder %s19, 0
    %p126 = por %p124, %p125
    %s127 = ssub.s32 %s21, %s28
    %p128 = scmp.eq.s32.totalorder %s127, 0
    %s130 = sadd.s32 %s129, 1
    %s131 = scalar_select %p128, %s129, %s130
    %p134 = pneg %p128
    %p135 = scmp.eq.s32.totalorder %s13, 1
    %p136 = por %p134, %p135
    %p137 = scmp.ne.s32.totalorder %s129, %s132
    %p138 = scmp.eq.s32.totalorder %s13, 0
    %p139 = por %p137, %p138
    %p140 = scmp.ne.s32.totalorder %s129, %s132
    %p141 = scmp.eq.s32.totalorder %s18, 1
    %p142 = por %p140, %p141
    %p143 = scmp.ne.s32.totalorder %s132, %s133
    %p144 = scmp.eq.s32.totalorder %s18, 0
    %p145 = por %p143, %p144
    %p146 = scmp.ne.s32.totalorder %s132, %s133
    %p147 = scmp.eq.s32.totalorder %s19, 1
    %p148 = por %p146, %p147
    %p150 = scmp.ne.s32.totalorder %s133, %s149
    %p151 = scmp.eq.s32.totalorder %s19, 0
    %p152 = por %p150, %p151
    %s153 = ssub.s32 %s21, %s28
    %p154 = scmp.eq.s32.totalorder %s153, 0
    %s156 = sadd.s32 %s155, 1
    %s157 = scalar_select %p154, %s155, %s156
    %p160 = pneg %p154
    %p161 = scmp.eq.s32.totalorder %s13, 1
    %p162 = por %p160, %p161
    %p163 = scmp.ne.s32.totalorder %s155, %s158
    %p164 = scmp.eq.s32.totalorder %s13, 0
    %p165 = por %p163, %p164
    %p166 = scmp.ne.s32.totalorder %s155, %s158
    %p167 = scmp.eq.s32.totalorder %s18, 1
    %p168 = por %p166, %p167
    %p169 = scmp.ne.s32.totalorder %s158, %s159
    %p170 = scmp.eq.s32.totalorder %s18, 0
    %p171 = por %p169, %p170
    %p172 = scmp.ne.s32.totalorder %s158, %s159
    %p173 = scmp.eq.s32.totalorder %s19, 1
    %p174 = por %p172, %p173
    %p176 = scmp.ne.s32.totalorder %s159, %s175
    %p177 = scmp.eq.s32.totalorder %s19, 0
    %p178 = por %p176, %p177
    %s180 = sadd.s32 %s179, 1
    %p183 = scmp.eq.s32.totalorder %s13, 1
    %p184 = scmp.ne.s32.totalorder %s179, %s181
    %p185 = scmp.eq.s32.totalorder %s13, 0
    %p186 = por %p184, %p185
    %p187 = scmp.ne.s32.totalorder %s179, %s181
    %p188 = scmp.eq.s32.totalorder %s18, 1
    %p189 = por %p187, %p188
    %p190 = scmp.ne.s32.totalorder %s181, %s182
    %p191 = scmp.eq.s32.totalorder %s18, 0
    %p192 = por %p190, %p191
    %p193 = scmp.ne.s32.totalorder %s181, %s182
    %p194 = scmp.eq.s32.totalorder %s19, 1
    %p195 = por %p193, %p194
    %p197 = scmp.ne.s32.totalorder %s182, %s196
    %p198 = scmp.eq.s32.totalorder %s19, 0
    %p199 = por %p197, %p198
    %s200 = ssub.s32 %s20, %s32
    %p201 = scmp.eq.s32.totalorder %s200, 0
    %s203 = sadd.s32 %s202, 1
    %s204 = scalar_select %p201, %s202, %s203
    %p207 = pneg %p201
    %p208 = scmp.eq.s32.totalorder %s13, 1
    %p209 = por %p207, %p208
    %p210 = scmp.ne.s32.totalorder %s202, %s205
    %p211 = scmp.eq.s32.totalorder %s13, 0
    %p212 = por %p210, %p211
    %p213 = scmp.ne.s32.totalorder %s202, %s205
    %p214 = scmp.eq.s32.totalorder %s18, 1
    %p215 = por %p213, %p214
    %p216 = scmp.ne.s32.totalorder %s205, %s206
    %p217 = scmp.eq.s32.totalorder %s18, 0
    %p218 = por %p216, %p217
    %p219 = scmp.ne.s32.totalorder %s205, %s206
    %p220 = scmp.eq.s32.totalorder %s19, 1
    %p221 = por %p219, %p220
    %p223 = scmp.ne.s32.totalorder %s206, %s222
    %p224 = scmp.eq.s32.totalorder %s19, 0
    %p225 = por %p223, %p224
    %p226 = scmp.le.s32.totalorder 1, %s13
    %p227 = scmp.lt.s32.totalorder %s13, 3
    %p228 = pnand %p226, %p227
    %p229 = pneg %p228
    // Predicated region
    $region9: #{transformer_forward.5} parent=5 // pred_check
      _
    $region10: #{transformer_forward.5} parent=5 // pred_check_branch
      %231 = sbr.rel (%p228) target = $region12
    $region11: #{transformer_forward.5} parent=5 // pred_region
      %s232 = ssub.s32 %s13, 1
      // Predicated region
      $region13: #{transformer_forward.5} parent=11 // pred_check
        %p233 = pneg %p72
      $region14: #{transformer_forward.5} parent=11 // pred_check_branch
        %235 = sbr.rel (%p233) target = $region16
      $region15: #{transformer_forward.5} parent=11 // pred_region
        _
      $region16: #{transformer_forward.5} parent=11 // pred_fallthru
        _
      // Predicated region
      $region17: #{transformer_forward.5} parent=11 // pred_check
        %p236 = pneg %p93
      $region18: #{transformer_forward.5} parent=11 // pred_check_branch
        %238 = sbr.rel (%p236) target = $region20
      $region19: #{transformer_forward.5} parent=11 // pred_region
        _
      $region20: #{transformer_forward.5} parent=11 // pred_fallthru
        _
      // Predicated region
      $region21: #{transformer_forward.5} parent=11 // pred_check
        %p239 = pneg %p119
      $region22: #{transformer_forward.5} parent=11 // pred_check_branch
        %241 = sbr.rel (%p239) target = $region24
      $region23: #{transformer_forward.5} parent=11 // pred_region
        %p242 = scmp.lt.s32.totalorder %s23, 0
        %s243 = scalar_select %p242, %s23, 0
        %s244 = smul.addr %s243, 8
        %s245 = scalar_lea.vmem %s3, %s244
      $region24: #{transformer_forward.5} parent=11 // pred_fallthru
        _
      // Predicated region
      $region25: #{transformer_forward.5} parent=11 // pred_check
        %p246 = pneg %p145
      $region26: #{transformer_forward.5} parent=11 // pred_check_branch
        %248 = sbr.rel (%p246) target = $region28
      $region27: #{transformer_forward.5} parent=11 // pred_region
        %p249 = scmp.lt.s32.totalorder %s23, 0
        %s250 = scalar_select %p249, %s23, 0
        %s251 = scalar_lea.vmem %s4, %s250
      $region28: #{transformer_forward.5} parent=11 // pred_fallthru
        _
      // Predicated region
      $region29: #{transformer_forward.5} parent=11 // pred_check
        %p252 = pneg %p171
      $region30: #{transformer_forward.5} parent=11 // pred_check_branch
        %254 = sbr.rel (%p252) target = $region32
      $region31: #{transformer_forward.5} parent=11 // pred_region
        %s255 = smul.u32 16, %s23
        %p256 = scmp.lt.s32.totalorder %s255, 15
        %s257 = scalar_select %p256, %s255, 15
        %s258 = smul.addr %s257, 8
        %s259 = scalar_lea.vmem %s5, %s258
        %s260 = smul.u32 16, %s23
      $region32: #{transformer_forward.5} parent=11 // pred_fallthru
        _
      // Predicated region
      $region33: #{transformer_forward.5} parent=11 // pred_check
        %p261 = pneg %p192
      $region34: #{transformer_forward.5} parent=11 // pred_check_branch
        %263 = sbr.rel (%p261) target = $region36
      $region35: #{transformer_forward.5} parent=11 // pred_region
        _
      $region36: #{transformer_forward.5} parent=11 // pred_fallthru
        _
    $region12: #{transformer_forward.5} parent=5 // pred_fallthru
      _
    %p264 = scmp.lt.s32.totalorder %s13, 2
    // Predicated region
    $region37: #{transformer_forward.5} parent=5 // pred_check
      %p265 = pneg %p264
    $region38: #{transformer_forward.5} parent=5 // pred_check_branch
      %267 = sbr.rel (%p265) target = $region40
    $region39: #{transformer_forward.5} parent=5 // pred_region
      // Predicated region
      $region41: #{transformer_forward.5} parent=39 // pred_check
        %p268 = pneg %p45
      $region42: #{transformer_forward.5} parent=39 // pred_check_branch
        %270 = sbr.rel (%p268) target = $region44
      $region43: #{transformer_forward.5} parent=39 // pred_region
        %p271 = scmp.lt.s32.totalorder %s20, 1
        %s272 = scalar_select %p271, %s20, 1
        %s273 = smul.addr %s272, 8
        %s274 = scalar_lea.vmem %s0, %s273
      $region44: #{transformer_forward.5} parent=39 // pred_fallthru
        _
    $region40: #{transformer_forward.5} parent=5 // pred_fallthru
      _
    %p275 = scmp.le.s32.totalorder 1, %s13
    %p276 = scmp.lt.s32.totalorder %s13, 3
    %p277 = pnand %p275, %p276
    %p278 = pneg %p277
    // Predicated region
    $region45: #{transformer_forward.5} parent=5 // pred_check
      _
    $region46: #{transformer_forward.5} parent=5 // pred_check_branch
      %280 = sbr.rel (%p277) target = $region48
    $region47: #{transformer_forward.5} parent=5 // pred_region
      %s281 = ssub.s32 %s13, 1
      %p282 = scmp.lt.s32.totalorder %s22, 1
      %s283 = scalar_select %p282, %s22, 1
      %s284 = smul.addr %s283, 8
      %s285 = scalar_lea.vmem %s0, %s284
      %p286 = pneg %p51
      %p287 = pneg %p48
      %p288 = pneg %p72
      %p289 = pneg %p69
      %p290 = pneg %p93
      %p291 = pneg %p90
      %p292 = scmp.lt.s32.totalorder %s23, 0
      %s293 = scalar_select %p292, %s23, 0
      %s294 = smul.addr %s293, 8
      %s295 = scalar_lea.vmem %s3, %s294
      %p296 = pneg %p119
      %p297 = pneg %p116
      %p298 = scmp.lt.s32.totalorder %s23, 0
      %s299 = scalar_select %p298, %s23, 0
      %s300 = scalar_lea.vmem %s4, %s299
      %p301 = pneg %p145
      %p302 = pneg %p142
      %s303 = smul.u32 16, %s23
      %p304 = scmp.lt.s32.totalorder %s303, 15
      %s305 = scalar_select %p304, %s303, 15
      %s306 = smul.addr %s305, 8
      %s307 = scalar_lea.vmem %s5, %s306
      %p308 = pneg %p171
      %p309 = pneg %p168
      %p310 = pneg %p192
      %p311 = pneg %p189
      %p312 = pneg %p218
      %p313 = pneg %p215
      %p314 = scmp.lt.s32.totalorder %s22, 1
      %s315 = scalar_select %p314, %s22, 1
      %s316 = smul.addr %s315, 8
      %s317 = scalar_lea.vmem %s7, %s316
      %p318 = scmp.lt.s32.totalorder %s22, 1
      %s319 = scalar_select %p318, %s22, 1
      %s320 = smul.addr %s319, 8
      %s321 = scalar_lea.vmem %s0, %s320
      %p322 = scmp.lt.s32.totalorder %s23, 0
      %s323 = scalar_select %p322, %s23, 0
      %s324 = smul.addr %s323, 8
      %s325 = scalar_lea.vmem %s3, %s324
      %p326 = scmp.lt.s32.totalorder %s23, 0
      %s327 = scalar_select %p326, %s23, 0
      %s328 = scalar_lea.vmem %s4, %s327
      %s329 = smul.u32 16, %s23
      %p330 = scmp.lt.s32.totalorder %s329, 15
      %s331 = scalar_select %p330, %s329, 15
      %s332 = smul.addr %s331, 8
      %s333 = scalar_lea.vmem %s5, %s332
      %s334 = smul.u32 16, %s23
      %p335 = scmp.lt.s32.totalorder %s22, 1
      %s336 = scalar_select %p335, %s22, 1
      %s337 = smul.addr %s336, 8
      %s338 = scalar_lea.vmem %s7, %s337
      %p339 = scmp.eq.s32.totalorder %s23, 0
      // Predicated region
      $region49: #{transformer_forward.5} parent=47 // pred_check
        %p340 = pneg %p339
      $region50: #{transformer_forward.5} parent=47 // pred_check_branch
        %342 = sbr.rel (%p340) target = $region52
      $region51: #{transformer_forward.5} parent=47 // pred_region
        %v343 = vld [vmem:[%s321] sm:$0xff]
        %v344 = vlaneseq
        %v345 = vand.u32 %v344, 127
        %vm346 = vcmp.lt.s32.totalorder %v345, 32
        %v347 = vsel %vm346, 1, 0
        %v348 = vcvt.s32.f32 %v347
        %v349 = vmul.f32 %v343, %v348
        %350 = vadd.xlane.f32.xlu0 %v349
        %v351 = vpop.xlane.xlu0 %350
        %v352 = vmul.f32 %v351, 0.03125
        %v353 = vsub.f32 %v349, %v352
        %v354 = vmul.f32 %v353, %v348
        %v355 = vmul.f32 %v354, %v354
        %356 = vadd.xlane.f32.xlu0 %v355
        %v357 = vpop.xlane.xlu0 %356
        %v358 = vmul.f32 %v357, 0.03125
        %v359 = vadd.f32 %v358, 1e-05
        %v360 = vrsqrt.pop %v359
        %v361 = vmul.f32 %v354, %v360
        %v362 = vld [vmem:[%s1] sm:$0x1]
        %v364 = vlaneseq
        %v365 = vshrl.u32 %v364, 7
        %v366 = vsub.s32 0, %v365
        %v367 = vrot.slane %v362, %v366
        %v369 = vmul.f32 %v361, %v367
        %v370 = vld [vmem:[%s2] sm:$0x1]
        %v372 = vlaneseq
        %v373 = vshrl.u32 %v372, 7
        %v374 = vsub.s32 0, %v373
        %v375 = vrot.slane %v370, %v374
        %v377 = vadd.f32 %v369, %v375
        %378 = vst [vmem:[#allocation2] sm:$0xff] %v377
        %v379 = vld [vmem:[%s6] sm:$0x1]
        %v381 = vlaneseq
        %v382 = vshrl.u32 %v381, 7
        %v383 = vsub.s32 0, %v382
        %v384 = vrot.slane %v379, %v383
        %v386 = vadd.f32 %v349, %v384
        %387 = vst [vmem:[#allocation3] sm:$0xff] %v386
      $region52: #{transformer_forward.5} parent=47 // pred_fallthru
        _
      %v388 = vld [vmem:[#allocation2] sm:$0xff]
      %v389 = vld [vmem:[%s325] sm:$0xff]
      %v390 = vld [vmem:[%s325 + $0x8] sm:$0xff]
      %v391 = vld [vmem:[%s325 + $0x10] sm:$0xff]
      %v392 = vld [vmem:[%s325 + $0x18] sm:$0xff]
      %v393 = vld [vmem:[%s325 + $0x20] sm:$0xff]
      %v394 = vld [vmem:[%s325 + $0x28] sm:$0xff]
      %v395 = vld [vmem:[%s325 + $0x30] sm:$0xff]
      %v396 = vld [vmem:[%s325 + $0x38] sm:$0xff]
      %v397 = vld [vmem:[%s325 + $0x40] sm:$0xff]
      %v398 = vld [vmem:[%s325 + $0x48] sm:$0xff]
      %v399 = vld [vmem:[%s325 + $0x50] sm:$0xff]
      %v400 = vld [vmem:[%s325 + $0x58] sm:$0xff]
      %v401 = vld [vmem:[%s325 + $0x60] sm:$0xff]
      %v402 = vld [vmem:[%s325 + $0x68] sm:$0xff]
      %v403 = vld [vmem:[%s325 + $0x70] sm:$0xff]
      %v404 = vld [vmem:[%s325 + $0x78] sm:$0xff]
      %v405 = vld [vmem:[%s328] sm:$0x1]
      %v407 = vlaneseq
      %v408 = vshrl.u32 %v407, 7
      %v409 = vsub.s32 0, %v408
      %v410 = vrot.slane %v405, %v409
      %412 = vmatprep.subr.mxu0 0.0
      %413 = vmatpush1.msra.mxu0 %v389
      %414 = vmatprep.subr.mxu0 0.0
      %415 = vmatpush1.msra.mxu0 %v390
      %416 = vmatprep.subr.mxu0 0.0
      %417 = vmatpush1.msra.mxu0 %v391
      %418 = vmatprep.subr.mxu0 0.0
      %419 = vmatpush1.msra.mxu0 %v392
      %420 = vmatprep.subr.mxu0 0.0
      %421 = vmatpush1.msra.mxu0 %v393
      %422 = vmatprep.subr.mxu0 0.0
      %423 = vmatpush1.msra.mxu0 %v394
      %424 = vmatprep.subr.mxu0 0.0
      %425 = vmatpush1.msra.mxu0 %v395
      %426 = vmatprep.subr.mxu0 0.0
      %427 = vmatpush1.msra.mxu0 %v396
      %428 = vmatprep.subr.mxu0 0.0
      %429 = vmatpush1.msra.mxu0 %v397
      %430 = vmatprep.subr.mxu0 0.0
      %431 = vmatpush1.msra.mxu0 %v398
      %432 = vmatprep.subr.mxu0 0.0
      %433 = vmatpush1.msra.mxu0 %v399
      %434 = vmatprep.subr.mxu0 0.0
      %435 = vmatpush1.msra.mxu0 %v400
      %436 = vmatprep.subr.mxu0 0.0
      %437 = vmatpush1.msra.mxu0 %v401
      %438 = vmatprep.subr.mxu0 0.0
      %439 = vmatpush1.msra.mxu0 %v402
      %440 = vmatprep.subr.mxu0 0.0
      %441 = vmatpush1.msra.mxu0 %v403
      %442 = vmatprep.subr.mxu0 0.0
      %443 = vmatpush1.msra.mxu0 %v404
      %444 = vmatprep.subr.mxu0 0.0
      %445 = vmatpush1.msra.mxu0 0.0
      %446 = vmatprep.subr.mxu0 0.0
      %447 = vmatpush1.msra.mxu0 0.0
      %448 = vmatprep.subr.mxu0 0.0
      %449 = vmatpush1.msra.mxu0 0.0
      %450 = vmatprep.subr.mxu0 0.0
      %451 = vmatpush1.msra.mxu0 0.0
      %452 = vmatprep.subr.mxu0 0.0
      %453 = vmatpush1.msra.mxu0 0.0
      %454 = vmatprep.subr.mxu0 0.0
      %455 = vmatpush1.msra.mxu0 0.0
      %456 = vmatprep.subr.mxu0 0.0
      %457 = vmatpush1.msra.mxu0 0.0
      %458 = vmatprep.subr.mxu0 0.0
      %459 = vmatpush1.msra.mxu0 0.0
      %460 = vmatprep.subr.mxu0 0.0
      %461 = vmatpush1.msra.mxu0 0.0
      %462 = vmatprep.subr.mxu0 0.0
      %463 = vmatpush1.msra.mxu0 0.0
      %464 = vmatprep.subr.mxu0 0.0
      %465 = vmatpush1.msra.mxu0 0.0
      %466 = vmatprep.subr.mxu0 0.0
      %467 = vmatpush1.msra.mxu0 0.0
      %468 = vmatprep.subr.mxu0 0.0
      %469 = vmatpush1.msra.mxu0 0.0
      %470 = vmatprep.subr.mxu0 0.0
      %471 = vmatpush1.msra.mxu0 0.0
      %472 = vmatprep.subr.mxu0 0.0
      %473 = vmatpush1.msra.mxu0 0.0
      %474 = vmatprep.subr.mxu0 0.0
      %475 = vmatpush1.msra.mxu0 0.0
      %476 = vmatprep.mubr.f32.mxu0 0.0
      %477 = vmatmul.mubr.f32.gmra.mrb[0].mxu0 %v388
      %v478 = vpop.f32.mrb[0].mxu0
      %v479 = vadd.f32 %v410, %v478
      %v480 = vpop.f32.mrb[0].mxu0
      %481 = vdwg.mxu0
      %v482 = vmul.f32 %v479, 0.5
      %v483 = vmul.f32 %v479, 0.70710677
      %v484 = verf.f32.pop %v483
      %v485 = vadd.f32 %v484, 1.0
      %v486 = vmul.f32 %v482, %v485
      %v487 = vld [vmem:[#allocation3] sm:$0xff]
      %v488 = vld [vmem:[%s333] sm:$0xff]
      %v489 = vld [vmem:[%s333 + $0x8] sm:$0xff]
      %v490 = vld [vmem:[%s333 + $0x10] sm:$0xff]
      %v491 = vld [vmem:[%s333 + $0x18] sm:$0xff]
      %v492 = vld [vmem:[%s333 + $0x20] sm:$0xff]
      %v493 = vld [vmem:[%s333 + $0x28] sm:$0xff]
      %v494 = vld [vmem:[%s333 + $0x30] sm:$0xff]
      %v495 = vld [vmem:[%s333 + $0x38] sm:$0xff]
      %v496 = vld [vmem:[%s333 + $0x40] sm:$0xff]
      %v497 = vld [vmem:[%s333 + $0x48] sm:$0xff]
      %v498 = vld [vmem:[%s333 + $0x50] sm:$0xff]
      %v499 = vld [vmem:[%s333 + $0x58] sm:$0xff]
      %v500 = vld [vmem:[%s333 + $0x60] sm:$0xff]
      %v501 = vld [vmem:[%s333 + $0x68] sm:$0xff]
      %v502 = vld [vmem:[%s333 + $0x70] sm:$0xff]
      %v503 = vld [vmem:[%s333 + $0x78] sm:$0xff]
      %504 = vmatprep.subr.mxu0 0.0
      %505 = vmatpush1.msra.mxu0 %v488
      %506 = vmatprep.subr.mxu0 0.0
      %507 = vmatpush1.msra.mxu0 %v489
      %508 = vmatprep.subr.mxu0 0.0
      %509 = vmatpush1.msra.mxu0 %v490
      %510 = vmatprep.subr.mxu0 0.0
      %511 = vmatpush1.msra.mxu0 %v491
      %512 = vmatprep.subr.mxu0 0.0
      %513 = vmatpush1.msra.mxu0 %v492
      %514 = vmatprep.subr.mxu0 0.0
      %515 = vmatpush1.msra.mxu0 %v493
      %516 = vmatprep.subr.mxu0 0.0
      %517 = vmatpush1.msra.mxu0 %v494
      %518 = vmatprep.subr.mxu0 0.0
      %519 = vmatpush1.msra.mxu0 %v495
      %520 = vmatprep.subr.mxu0 0.0
      %521 = vmatpush1.msra.mxu0 %v496
      %522 = vmatprep.subr.mxu0 0.0
      %523 = vmatpush1.msra.mxu0 %v497
      %524 = vmatprep.subr.mxu0 0.0
      %525 = vmatpush1.msra.mxu0 %v498
      %526 = vmatprep.subr.mxu0 0.0
      %527 = vmatpush1.msra.mxu0 %v499
      %528 = vmatprep.subr.mxu0 0.0
      %529 = vmatpush1.msra.mxu0 %v500
      %530 = vmatprep.subr.mxu0 0.0
      %531 = vmatpush1.msra.mxu0 %v501
      %532 = vmatprep.subr.mxu0 0.0
      %533 = vmatpush1.msra.mxu0 %v502
      %534 = vmatprep.subr.mxu0 0.0
      %535 = vmatpush1.msra.mxu0 %v503
      %536 = vmatprep.subr.mxu0 0.0
      %537 = vmatpush1.msra.mxu0 0.0
      %538 = vmatprep.subr.mxu0 0.0
      %539 = vmatpush1.msra.mxu0 0.0
      %540 = vmatprep.subr.mxu0 0.0
      %541 = vmatpush1.msra.mxu0 0.0
      %542 = vmatprep.subr.mxu0 0.0
      %543 = vmatpush1.msra.mxu0 0.0
      %544 = vmatprep.subr.mxu0 0.0
      %545 = vmatpush1.msra.mxu0 0.0
      %546 = vmatprep.subr.mxu0 0.0
      %547 = vmatpush1.msra.mxu0 0.0
      %548 = vmatprep.subr.mxu0 0.0
      %549 = vmatpush1.msra.mxu0 0.0
      %550 = vmatprep.subr.mxu0 0.0
      %551 = vmatpush1.msra.mxu0 0.0
      %552 = vmatprep.subr.mxu0 0.0
      %553 = vmatpush1.msra.mxu0 0.0
      %554 = vmatprep.subr.mxu0 0.0
      %555 = vmatpush1.msra.mxu0 0.0
      %556 = vmatprep.subr.mxu0 0.0
      %557 = vmatpush1.msra.mxu0 0.0
      %558 = vmatprep.subr.mxu0 0.0
      %559 = vmatpush1.msra.mxu0 0.0
      %560 = vmatprep.subr.mxu0 0.0
      %561 = vmatpush1.msra.mxu0 0.0
      %562 = vmatprep.subr.mxu0 0.0
      %563 = vmatpush1.msra.mxu0 0.0
      %564 = vmatprep.subr.mxu0 0.0
      %565 = vmatpush1.msra.mxu0 0.0
      %566 = vmatprep.subr.mxu0 0.0
      %567 = vmatpush1.msra.mxu0 0.0
      %568 = vmatprep.mubr.f32.mxu0 0.0
      %569 = vmatmul.mubr.f32.gmra.mrb[0].mxu0 %v486
      %v570 = vpop.f32.mrb[0].mxu0
      %v571 = vadd.f32 0.0, %v570
      %v572 = vpop.f32.mrb[0].mxu0
      %573 = vdwg.mxu0
      %v574 = vadd.f32 %v487, %v571
      %575 = vst [vmem:[#allocation3] sm:$0xff] %v574
      // Predicated region
      $region53: #{transformer_forward.5} parent=47 // pred_check
        %p576 = pneg %p339
      $region54: #{transformer_forward.5} parent=47 // pred_check_branch
        %578 = sbr.rel (%p576) target = $region56
      $region55: #{transformer_forward.5} parent=47 // pred_region
        %v579 = vld [vmem:[#allocation3] sm:$0xff]
        %580 = vst [vmem:[%s338] sm:$0xff] %v579
      $region56: #{transformer_forward.5} parent=47 // pred_fallthru
        _
      %p581 = scmp.lt.s32.totalorder %s22, 1
      %s582 = scalar_select %p581, %s22, 1
      %s583 = smul.addr %s582, 8
      %s584 = scalar_lea.vmem %s7, %s583
      // Predicated region
      $region57: #{transformer_forward.5} parent=47 // pred_check
        %p585 = pneg %p215
      $region58: #{transformer_forward.5} parent=47 // pred_check_branch
        %587 = sbr.rel (%p585) target = $region60
      $region59: #{transformer_forward.5} parent=47 // pred_region
        _
      $region60: #{transformer_forward.5} parent=47 // pred_fallthru
        _
    $region48: #{transformer_forward.5} parent=5 // pred_fallthru
      _
    %p588 = scmp.le.s32.totalorder 2, %s13
    // Predicated region
    $region61: #{transformer_forward.5} parent=5 // pred_check
      %p589 = pneg %p588
    $region62: #{transformer_forward.5} parent=5 // pred_check_branch
      %591 = sbr.rel (%p589) target = $region64
    $region63: #{transformer_forward.5} parent=5 // pred_region
      %s592 = ssub.s32 %s13, 2
      // Predicated region
      $region65: #{transformer_forward.5} parent=63 // pred_check
        %p593 = pneg %p221
      $region66: #{transformer_forward.5} parent=63 // pred_check_branch
        %595 = sbr.rel (%p593) target = $region68
      $region67: #{transformer_forward.5} parent=63 // pred_region
        %p596 = scmp.lt.s32.totalorder %s24, 1
        %s597 = scalar_select %p596, %s24, 1
        %s598 = smul.addr %s597, 8
        %s599 = scalar_lea.vmem %s7, %s598
      $region68: #{transformer_forward.5} parent=63 // pred_fallthru
        _
    $region64: #{transformer_forward.5} parent=5 // pred_fallthru
      _
  $region6: #{transformer_forward.5} parent=0 // loop_footer
    %s17 = sadd.s32 1, %s13
  $region7: #{transformer_forward.5} parent=0 // loop_footer_branch
    %12 = sbr.rel target = $region3
  $region8: #{transformer_forward.5} parent=0 // loop_exit
    _

</llo_original>
